<compile_context>
chip_gen: v6e
topology: v6e:2x2x1
jax: 0.10.0
libtpu: 0.0.40
codegen_flags: <defaults>
</compile_context>

<pallas_src>
import functools

import jax
import jax.numpy as jnp
from jax.experimental import pallas as pl
from jax.experimental.pallas import tpu as pltpu


def _round_up(v, m):
    return ((v + m - 1) // m) * m


def _lnn_kernel(x_ref, mzu_ref, b1_ref, w2_ref, wf_ref, out_ref, *, n, refine_iters):
    f32 = jnp.float32
    h = b1_ref.shape[0]
    nn = n * n

    xt = x_ref[...]                                   # (2n, TB) feature-major, batch on lanes
    qd = xt[n:, :]                                    # (n, TB)

    # ---- fused prologue matmuls (whole tile at once, MXU) ----
    # M_zu = [W1; [0 | W1[:, :n]]]:
    #   rows [0:H)  -> z_pre = W1 @ x         (pre-activation)
    #   rows [H:2H) -> u     = W1[:, :n] @ qd (reused for hess[n:, :n] @ qd)
    zu = jnp.dot(mzu_ref[...], xt, preferred_element_type=f32)        # (2H, TB)
    z = zu[:h, :] + b1_ref[...]                                       # (H, TB)
    u = zu[h:, :]                                                     # (H, TB)

    t = jnp.tanh(z)
    s = w2_ref[...] * (1.0 - t * t)                                   # dL/dz     (H, TB)
    r = -2.0 * t * s                                                  # d2L/dz2   (H, TB)

    # single fused MXU call producing [a_flat; bvec]:
    #   a_flat[i*n+j] = sum_h r_h W1q[h,i] W1q[h,j]   (flattened hess[n:, n:])
    #   bvec          = jac[:n] - hess[n:, :n] @ qd
    rhs = jnp.concatenate([r, s, r * u], axis=0)                      # (3H, TB)
    fused = jnp.dot(wf_ref[...], rhs, preferred_element_type=f32)     # (n*n + n, TB)
    a_flat = fused[:nn, :]                                            # (n*n, TB) packed dense
    bvec = fused[nn:, :]                                              # (n, TB)

    # ---- batched helpers on the packed (n*n, TB) layout (batch stays on the lane axis) ----
    def bmm(ap, bp):                                  # per-sample (n,n) @ (n,n)
        blocks = []
        for i in range(n):
            acc = ap[i * n:i * n + 1, :] * bp[0:n, :]
            for k in range(1, n):
                acc = acc + ap[i * n + k:i * n + k + 1, :] * bp[k * n:(k + 1) * n, :]
            blocks.append(acc)
        return jnp.concatenate(blocks, axis=0)        # (n*n, TB)

    def matvec(ap, v):                                # per-sample (n,n) @ (n,)
        rows = []
        for i in range(n):
            acc = ap[i * n:i * n + 1, :] * v[0:1, :]
            for j in range(1, n):
                acc = acc + ap[i * n + j:i * n + j + 1, :] * v[j:j + 1, :]
            rows.append(acc)
        return jnp.concatenate(rows, axis=0)          # (n, TB)

    # ---- closed-form solve A @ qdd = bvec via Faddeev-LeVerrier / Cayley-Hamilton ----
    # TODO(synk): matches torch.pinverse only for full-rank blocks; there is no rcond-style
    # singular-value thresholding, so exactly rank-deficient Hessian blocks deviate from the
    # SVD pseudo-inverse (same caveat as the previous Newton-Schulz version).
    scale = jnp.max(jnp.abs(a_flat), axis=0, keepdims=True)           # (1, TB)
    inv_scale = pl.reciprocal(jnp.maximum(scale, 1e-30), approx=True)  # consistent rescale
    a_s = a_flat * inv_scale                                          # entries in [-1, 1]
    b_s = bvec * inv_scale

    # matrix powers needed for the power sums p_k = tr(A^k), k = 1..n (A symmetric)
    m_pow = (n + 1) // 2
    pows = [a_s]
    for _ in range(m_pow - 1):
        pows.append(bmm(a_s, pows[-1]))

    p = [None] * (n + 1)
    tr = a_s[0:1, :]
    for i in range(1, n):
        tr = tr + a_s[i * n + i:i * n + i + 1, :]
    p[1] = tr
    for k in range(2, n + 1):
        i1 = k // 2
        i2 = k - i1
        p[k] = jnp.sum(pows[i1 - 1] * pows[i2 - 1], axis=0, keepdims=True)

    # Newton's identities -> characteristic polynomial lambda^n + c[n-1] l^(n-1) + ... + c[0]
    e = [jnp.ones_like(p[1])]
    for k in range(1, n + 1):
        acc = e[k - 1] * p[1]
        for i in range(2, k + 1):
            term = e[k - i] * p[i]
            acc = acc + term if (i % 2 == 1) else acc - term
        e.append(acc * (1.0 / k))
    c = [((-1.0) ** (n - j)) * e[n - j] for j in range(n)]

    c0 = c[0]                                                         # (-1)^n det(A_s)
    c0_safe = jnp.where(jnp.abs(c0) > 1e-30, c0,
                        jnp.where(c0 >= 0.0, 1e-30, -1e-30))          # near-singular guard
    neg_inv_c0 = -1.0 / c0_safe

    def apply_inv(v):                                 # A_s^{-1} @ v via Horner on Cayley-Hamilton
        acc = v
        for j in range(n - 1, 0, -1):
            acc = matvec(a_s, acc) + c[j] * v
        return acc * neg_inv_c0

    qdd = apply_inv(b_s)
    for _ in range(refine_iters):                     # cheap fp32 iterative refinement
        qdd = qdd + apply_inv(b_s - matvec(a_s, qdd))

    # one lane-dense full-block store: out^T tile = [qd; qdd]
    out_ref[...] = jnp.concatenate([qd, qdd], axis=0).astype(out_ref.dtype)


def lnn_forward(x, W1, b1, w2, *, tb=512, refine_iters=1):
    """LNN forward for a 2-layer tanh MLP Lagrangian net.  x: (B, 2n) -> (B, 2n)."""
    orig_dtype = jnp.asarray(x).dtype
    x = jnp.asarray(x, jnp.float32)
    B, D = x.shape
    n = D // 2
    W1 = jnp.asarray(W1, jnp.float32)                 # (H, 2n)
    H = W1.shape[0]
    b1c = jnp.asarray(b1, jnp.float32).reshape(H, 1)
    w2c = jnp.asarray(w2, jnp.float32).reshape(H, 1)

    # ---- parameter-only fused matrices (built once, outside the kernel) ----
    W1p = W1[:, :n]                                   # columns acting on q
    W1q = W1[:, n:]                                   # columns acting on qd
    M_zu = jnp.concatenate(
        [W1, jnp.concatenate([jnp.zeros((H, n), jnp.float32), W1p], axis=1)], axis=0)  # (2H, 2n)
    # single fused weight for [a_flat; bvec] against rhs = [r; s; r*u]
    P = (W1q[:, :, None] * W1q[:, None, :]).transpose(1, 2, 0).reshape(n * n, H)       # (n*n, H)
    Wf = jnp.concatenate(
        [jnp.concatenate([P, jnp.zeros((n * n, 2 * H), jnp.float32)], axis=1),
         jnp.concatenate([jnp.zeros((n, H), jnp.float32), W1p.T, -W1q.T], axis=1)],
        axis=0)                                                                        # (n*n+n, 3H)

    # ---- batch tiling: lane-dense tiles; keep >= 2 grid steps when the padded batch allows
    # it so v7x's two TensorCores both get work (the grid axis is "parallel"). ----
    lane = 128
    bp = _round_up(max(B, 1), lane)
    tb_eff = min(tb, bp)
    if bp // tb_eff < 2 and bp >= 2 * lane:
        tb_eff = _round_up((bp + 1) // 2, lane)
    bp = _round_up(bp, tb_eff)
    x_t = jnp.pad(x.T, ((0, 0), (0, bp - B)))         # (2n, Bp) feature-major, batch on lanes

    flops_per_col = 2 * (2 * H) * D + 2 * (n * n + n) * (3 * H) + 60 * n ** 3
    cost = pl.CostEstimate(
        flops=int(bp * flops_per_col),
        transcendentals=int(bp * H),
        bytes_accessed=int(4 * (2 * bp * D + M_zu.size + Wf.size + 2 * H)))

    kernel = functools.partial(_lnn_kernel, n=n, refine_iters=refine_iters)
    out_t = pl.pallas_call(
        kernel,
        out_shape=jax.ShapeDtypeStruct((D, bp), jnp.float32),
        grid=(bp // tb_eff,),
        in_specs=[
            pl.BlockSpec((D, tb_eff), lambda i: (0, i)),         # x^T tile (batch on 128-lane axis)
            pl.BlockSpec((2 * H, D), lambda i: (0, 0)),          # M_zu (fused z / u weights)
            pl.BlockSpec((H, 1), lambda i: (0, 0)),              # b1
            pl.BlockSpec((H, 1), lambda i: (0, 0)),              # w2
            pl.BlockSpec((n * n + n, 3 * H), lambda i: (0, 0)),  # fused [P | Wb] weights
        ],
        out_specs=pl.BlockSpec((D, tb_eff), lambda i: (0, i)),
        compiler_params=pltpu.CompilerParams(dimension_semantics=("parallel",)),
        cost_estimate=cost,
    )(x_t, M_zu, b1c, w2c, Wf)

    return out_t[:, :B].T.astype(orig_dtype)


# ---------------- pure-JAX reference mirroring the PyTorch module ----------------
def _net_apply(params, qqd):
    W1, b1, w2, b2 = params
    return jnp.dot(w2, jnp.tanh(W1 @ qqd + b1)) + b2     # scalar == net(qqd).sum()


def lnn_reference(params, x):
    n = x.shape[1] // 2
    lag = lambda qqd: _net_apply(params, qqd)
    rows = []
    for i in range(x.shape[0]):
        qqd = x[i]
        jac = jax.jacobian(lag)(qqd)                     # (2n,)
        hess = jax.hessian(lag)(qqd)                     # (2n, 2n)
        qd = qqd[n:]
        qdd = jnp.linalg.pinv(hess[n:, n:]) @ (jac[:n] - hess[n:, :n] @ qd)
        rows.append(jnp.concatenate([qd, qdd]))
    return jnp.stack(rows)


if __name__ == "__main__":
    B, n, HID = 4, 4, 32
    D = 2 * n

    key = jax.random.PRNGKey(0)
    kW1, kb1, kw2, kb2, kx = jax.random.split(key, 5)
    W1 = jax.random.normal(kW1, (HID, D), jnp.float32) / jnp.sqrt(D)
    b1 = jax.random.normal(kb1, (HID,), jnp.float32) * 0.1
    w2 = jax.random.normal(kw2, (HID,), jnp.float32) / jnp.sqrt(HID)
    b2 = jax.random.normal(kb2, (), jnp.float32) * 0.1

    x = jax.random.normal(kx, (B, D), jnp.float32)       # (batch, [q, qd])

    out = jax.block_until_ready(lnn_forward(x, W1, b1, w2))
    assert out.shape == (B, D)

    with jax.default_matmul_precision("highest"):
        ref = lnn_reference((W1, b1, w2, b2), x)
    assert bool(jnp.allclose(out, ref, rtol=5e-2, atol=5e-2)), (
        "max abs err = %g" % float(jnp.max(jnp.abs(out - ref))))

    # multi-step grid / padding smoke test (exercises the >=2-step "parallel" grid path)
    xb = jax.random.normal(jax.random.PRNGKey(1), (300, D), jnp.float32)
    outb = jax.block_until_ready(lnn_forward(xb, W1, b1, w2))
    assert outb.shape == (300, D)
    assert bool(jnp.all(jnp.isfinite(outb)))

    print("KERNEL_OK")
</pallas_src>

<mosaic_0001>
module attributes {stable_mosaic.version = 11 : i64} {
  func.func @_lnn_kernel(%arg0: i32, %arg1: memref<8x128xf32, #tpu.memory_space<vmem>>, %arg2: memref<64x8xf32, #tpu.memory_space<vmem>>, %arg3: memref<32x1xf32, #tpu.memory_space<vmem>>, %arg4: memref<32x1xf32, #tpu.memory_space<vmem>>, %arg5: memref<20x96xf32, #tpu.memory_space<vmem>>, %arg6: memref<8x128xf32, #tpu.memory_space<vmem>>) attributes {dimension_semantics = [#tpu.dimension_semantics<parallel>], iteration_bounds = array<i64: 1>, scalar_prefetch = 0 : i64, scratch_operands = 0 : i64, tpu.core_type = #tpu.core_type<tc>, window_params = [{transform_indices = @transform_0, window_bounds = array<i64: 8, 128>}, {pipeline_mode = #tpu.pipeline_mode<synchronous>, transform_indices = @transform_1, window_bounds = array<i64: 64, 8>}, {pipeline_mode = #tpu.pipeline_mode<synchronous>, transform_indices = @transform_2, window_bounds = array<i64: 32, 1>}, {pipeline_mode = #tpu.pipeline_mode<synchronous>, transform_indices = @transform_3, window_bounds = array<i64: 32, 1>}, {pipeline_mode = #tpu.pipeline_mode<synchronous>, transform_indices = @transform_4, window_bounds = array<i64: 20, 96>}, {transform_indices = @transform_5, window_bounds = array<i64: 8, 128>}]} {
    %c0 = arith.constant 0 : index
    %c0_0 = arith.constant 0 : index
    %0 = vector.load %arg1[%c0, %c0_0] : memref<8x128xf32, #tpu.memory_space<vmem>>, vector<8x128xf32>
    %1 = vector.extract_strided_slice %0 {offsets = [4, 0], sizes = [4, 128], strides = [1, 1]} : vector<8x128xf32> to vector<4x128xf32>
    %c0_1 = arith.constant 0 : index
    %c0_2 = arith.constant 0 : index
    %2 = vector.load %arg2[%c0_1, %c0_2] : memref<64x8xf32, #tpu.memory_space<vmem>>, vector<64x8xf32>
    %cst = arith.constant dense<0.000000e+00> : vector<64x128xf32>
    %3 = tpu.matmul %2, %0, %cst {dimension_numbers = #tpu.dot_dimension_numbers<[1], [0], [0], [1], [0, 0, 1, 1], [], []>} : vector<64x8xf32>, vector<8x128xf32>, vector<64x128xf32> -> vector<64x128xf32>
    %4 = vector.extract_strided_slice %3 {offsets = [0, 0], sizes = [32, 128], strides = [1, 1]} : vector<64x128xf32> to vector<32x128xf32>
    %c0_3 = arith.constant 0 : index
    %c0_4 = arith.constant 0 : index
    %5 = vector.load %arg3[%c0_3, %c0_4] : memref<32x1xf32, #tpu.memory_space<vmem>>, vector<32x1xf32>
    %6 = vector.broadcast %5 : vector<32x1xf32> to vector<32x128xf32>
    %7 = arith.addf %4, %6 : vector<32x128xf32>
    %8 = vector.extract_strided_slice %3 {offsets = [32, 0], sizes = [32, 128], strides = [1, 1]} : vector<64x128xf32> to vector<32x128xf32>
    %9 = math.tanh %7 : vector<32x128xf32>
    %c0_5 = arith.constant 0 : index
    %c0_6 = arith.constant 0 : index
    %10 = vector.load %arg4[%c0_5, %c0_6] : memref<32x1xf32, #tpu.memory_space<vmem>>, vector<32x1xf32>
    %11 = arith.mulf %9, %9 : vector<32x128xf32>
    %cst_7 = arith.constant 1.000000e+00 : f32
    %12 = vector.broadcast %cst_7 : f32 to vector<32x128xf32>
    %13 = arith.subf %12, %11 : vector<32x128xf32>
    %14 = vector.broadcast %10 : vector<32x1xf32> to vector<32x128xf32>
    %15 = arith.mulf %14, %13 : vector<32x128xf32>
    %cst_8 = arith.constant -2.000000e+00 : f32
    %16 = vector.broadcast %cst_8 : f32 to vector<32x128xf32>
    %17 = arith.mulf %16, %9 : vector<32x128xf32>
    %18 = arith.mulf %17, %15 : vector<32x128xf32>
    %19 = arith.mulf %18, %8 : vector<32x128xf32>
    %20 = tpu.concatenate %18, %15, %19 in 0 : vector<32x128xf32>, vector<32x128xf32>, vector<32x128xf32> -> vector<96x128xf32>
    %c0_9 = arith.constant 0 : index
    %c0_10 = arith.constant 0 : index
    %21 = vector.load %arg5[%c0_9, %c0_10] : memref<20x96xf32, #tpu.memory_space<vmem>>, vector<20x96xf32>
    %cst_11 = arith.constant dense<0.000000e+00> : vector<20x128xf32>
    %22 = tpu.matmul %21, %20, %cst_11 {dimension_numbers = #tpu.dot_dimension_numbers<[1], [0], [0], [1], [0, 0, 1, 1], [], []>} : vector<20x96xf32>, vector<96x128xf32>, vector<20x128xf32> -> vector<20x128xf32>
    %23 = vector.extract_strided_slice %22 {offsets = [0, 0], sizes = [16, 128], strides = [1, 1]} : vector<20x128xf32> to vector<16x128xf32>
    %24 = vector.extract_strided_slice %22 {offsets = [16, 0], sizes = [4, 128], strides = [1, 1]} : vector<20x128xf32> to vector<4x128xf32>
    %25 = math.absf %23 : vector<16x128xf32>
    %cst_12 = arith.constant dense<0xFF800000> : vector<128xf32>
    %26 = vector.multi_reduction <maximumf>, %25, %cst_12 [0] : vector<16x128xf32> to vector<128xf32>
    %27 = vector.shape_cast %26 : vector<128xf32> to vector<1x128xf32>
    %cst_13 = arith.constant 1.000000e-30 : f32
    %28 = vector.broadcast %cst_13 : f32 to vector<1x128xf32>
    %29 = arith.maximumf %27, %28 : vector<1x128xf32>
    %30 = tpu.reciprocal %29 {approx = true} : vector<1x128xf32> -> vector<1x128xf32>
    %31 = vector.broadcast %30 : vector<1x128xf32> to vector<16x128xf32>
    %32 = arith.mulf %23, %31 : vector<16x128xf32>
    %33 = vector.broadcast %30 : vector<1x128xf32> to vector<4x128xf32>
    %34 = arith.mulf %24, %33 : vector<4x128xf32>
    %35 = vector.extract_strided_slice %32 {offsets = [0, 0], sizes = [1, 128], strides = [1, 1]} : vector<16x128xf32> to vector<1x128xf32>
    %36 = vector.extract_strided_slice %32 {offsets = [0, 0], sizes = [4, 128], strides = [1, 1]} : vector<16x128xf32> to vector<4x128xf32>
    %37 = vector.broadcast %35 : vector<1x128xf32> to vector<4x128xf32>
    %38 = arith.mulf %37, %36 : vector<4x128xf32>
    %39 = vector.extract_strided_slice %32 {offsets = [1, 0], sizes = [1, 128], strides = [1, 1]} : vector<16x128xf32> to vector<1x128xf32>
    %40 = vector.extract_strided_slice %32 {offsets = [4, 0], sizes = [4, 128], strides = [1, 1]} : vector<16x128xf32> to vector<4x128xf32>
    %41 = vector.broadcast %39 : vector<1x128xf32> to vector<4x128xf32>
    %42 = arith.mulf %41, %40 : vector<4x128xf32>
    %43 = arith.addf %38, %42 : vector<4x128xf32>
    %44 = vector.extract_strided_slice %32 {offsets = [2, 0], sizes = [1, 128], strides = [1, 1]} : vector<16x128xf32> to vector<1x128xf32>
    %45 = vector.extract_strided_slice %32 {offsets = [8, 0], sizes = [4, 128], strides = [1, 1]} : vector<16x128xf32> to vector<4x128xf32>
    %46 = vector.broadcast %44 : vector<1x128xf32> to vector<4x128xf32>
    %47 = arith.mulf %46, %45 : vector<4x128xf32>
    %48 = arith.addf %43, %47 : vector<4x128xf32>
    %49 = vector.extract_strided_slice %32 {offsets = [3, 0], sizes = [1, 128], strides = [1, 1]} : vector<16x128xf32> to vector<1x128xf32>
    %50 = vector.extract_strided_slice %32 {offsets = [12, 0], sizes = [4, 128], strides = [1, 1]} : vector<16x128xf32> to vector<4x128xf32>
    %51 = vector.broadcast %49 : vector<1x128xf32> to vector<4x128xf32>
    %52 = arith.mulf %51, %50 : vector<4x128xf32>
    %53 = arith.addf %48, %52 : vector<4x128xf32>
    %54 = vector.extract_strided_slice %32 {offsets = [4, 0], sizes = [1, 128], strides = [1, 1]} : vector<16x128xf32> to vector<1x128xf32>
    %55 = vector.extract_strided_slice %32 {offsets = [0, 0], sizes = [4, 128], strides = [1, 1]} : vector<16x128xf32> to vector<4x128xf32>
    %56 = vector.broadcast %54 : vector<1x128xf32> to vector<4x128xf32>
    %57 = arith.mulf %56, %55 : vector<4x128xf32>
    %58 = vector.extract_strided_slice %32 {offsets = [5, 0], sizes = [1, 128], strides = [1, 1]} : vector<16x128xf32> to vector<1x128xf32>
    %59 = vector.extract_strided_slice %32 {offsets = [4, 0], sizes = [4, 128], strides = [1, 1]} : vector<16x128xf32> to vector<4x128xf32>
    %60 = vector.broadcast %58 : vector<1x128xf32> to vector<4x128xf32>
    %61 = arith.mulf %60, %59 : vector<4x128xf32>
    %62 = arith.addf %57, %61 : vector<4x128xf32>
    %63 = vector.extract_strided_slice %32 {offsets = [6, 0], sizes = [1, 128], strides = [1, 1]} : vector<16x128xf32> to vector<1x128xf32>
    %64 = vector.extract_strided_slice %32 {offsets = [8, 0], sizes = [4, 128], strides = [1, 1]} : vector<16x128xf32> to vector<4x128xf32>
    %65 = vector.broadcast %63 : vector<1x128xf32> to vector<4x128xf32>
    %66 = arith.mulf %65, %64 : vector<4x128xf32>
    %67 = arith.addf %62, %66 : vector<4x128xf32>
    %68 = vector.extract_strided_slice %32 {offsets = [7, 0], sizes = [1, 128], strides = [1, 1]} : vector<16x128xf32> to vector<1x128xf32>
    %69 = vector.extract_strided_slice %32 {offsets = [12, 0], sizes = [4, 128], strides = [1, 1]} : vector<16x128xf32> to vector<4x128xf32>
    %70 = vector.broadcast %68 : vector<1x128xf32> to vector<4x128xf32>
    %71 = arith.mulf %70, %69 : vector<4x128xf32>
    %72 = arith.addf %67, %71 : vector<4x128xf32>
    %73 = vector.extract_strided_slice %32 {offsets = [8, 0], sizes = [1, 128], strides = [1, 1]} : vector<16x128xf32> to vector<1x128xf32>
    %74 = vector.extract_strided_slice %32 {offsets = [0, 0], sizes = [4, 128], strides = [1, 1]} : vector<16x128xf32> to vector<4x128xf32>
    %75 = vector.broadcast %73 : vector<1x128xf32> to vector<4x128xf32>
    %76 = arith.mulf %75, %74 : vector<4x128xf32>
    %77 = vector.extract_strided_slice %32 {offsets = [9, 0], sizes = [1, 128], strides = [1, 1]} : vector<16x128xf32> to vector<1x128xf32>
    %78 = vector.extract_strided_slice %32 {offsets = [4, 0], sizes = [4, 128], strides = [1, 1]} : vector<16x128xf32> to vector<4x128xf32>
    %79 = vector.broadcast %77 : vector<1x128xf32> to vector<4x128xf32>
    %80 = arith.mulf %79, %78 : vector<4x128xf32>
    %81 = arith.addf %76, %80 : vector<4x128xf32>
    %82 = vector.extract_strided_slice %32 {offsets = [10, 0], sizes = [1, 128], strides = [1, 1]} : vector<16x128xf32> to vector<1x128xf32>
    %83 = vector.extract_strided_slice %32 {offsets = [8, 0], sizes = [4, 128], strides = [1, 1]} : vector<16x128xf32> to vector<4x128xf32>
    %84 = vector.broadcast %82 : vector<1x128xf32> to vector<4x128xf32>
    %85 = arith.mulf %84, %83 : vector<4x128xf32>
    %86 = arith.addf %81, %85 : vector<4x128xf32>
    %87 = vector.extract_strided_slice %32 {offsets = [11, 0], sizes = [1, 128], strides = [1, 1]} : vector<16x128xf32> to vector<1x128xf32>
    %88 = vector.extract_strided_slice %32 {offsets = [12, 0], sizes = [4, 128], strides = [1, 1]} : vector<16x128xf32> to vector<4x128xf32>
    %89 = vector.broadcast %87 : vector<1x128xf32> to vector<4x128xf32>
    %90 = arith.mulf %89, %88 : vector<4x128xf32>
    %91 = arith.addf %86, %90 : vector<4x128xf32>
    %92 = vector.extract_strided_slice %32 {offsets = [12, 0], sizes = [1, 128], strides = [1, 1]} : vector<16x128xf32> to vector<1x128xf32>
    %93 = vector.extract_strided_slice %32 {offsets = [0, 0], sizes = [4, 128], strides = [1, 1]} : vector<16x128xf32> to vector<4x128xf32>
    %94 = vector.broadcast %92 : vector<1x128xf32> to vector<4x128xf32>
    %95 = arith.mulf %94, %93 : vector<4x128xf32>
    %96 = vector.extract_strided_slice %32 {offsets = [13, 0], sizes = [1, 128], strides = [1, 1]} : vector<16x128xf32> to vector<1x128xf32>
    %97 = vector.extract_strided_slice %32 {offsets = [4, 0], sizes = [4, 128], strides = [1, 1]} : vector<16x128xf32> to vector<4x128xf32>
    %98 = vector.broadcast %96 : vector<1x128xf32> to vector<4x128xf32>
    %99 = arith.mulf %98, %97 : vector<4x128xf32>
    %100 = arith.addf %95, %99 : vector<4x128xf32>
    %101 = vector.extract_strided_slice %32 {offsets = [14, 0], sizes = [1, 128], strides = [1, 1]} : vector<16x128xf32> to vector<1x128xf32>
    %102 = vector.extract_strided_slice %32 {offsets = [8, 0], sizes = [4, 128], strides = [1, 1]} : vector<16x128xf32> to vector<4x128xf32>
    %103 = vector.broadcast %101 : vector<1x128xf32> to vector<4x128xf32>
    %104 = arith.mulf %103, %102 : vector<4x128xf32>
    %105 = arith.addf %100, %104 : vector<4x128xf32>
    %106 = vector.extract_strided_slice %32 {offsets = [15, 0], sizes = [1, 128], strides = [1, 1]} : vector<16x128xf32> to vector<1x128xf32>
    %107 = vector.extract_strided_slice %32 {offsets = [12, 0], sizes = [4, 128], strides = [1, 1]} : vector<16x128xf32> to vector<4x128xf32>
    %108 = vector.broadcast %106 : vector<1x128xf32> to vector<4x128xf32>
    %109 = arith.mulf %108, %107 : vector<4x128xf32>
    %110 = arith.addf %105, %109 : vector<4x128xf32>
    %111 = tpu.concatenate %53, %72, %91, %110 in 0 : vector<4x128xf32>, vector<4x128xf32>, vector<4x128xf32>, vector<4x128xf32> -> vector<16x128xf32>
    %112 = vector.extract_strided_slice %32 {offsets = [0, 0], sizes = [1, 128], strides = [1, 1]} : vector<16x128xf32> to vector<1x128xf32>
    %113 = vector.extract_strided_slice %32 {offsets = [5, 0], sizes = [1, 128], strides = [1, 1]} : vector<16x128xf32> to vector<1x128xf32>
    %114 = arith.addf %112, %113 : vector<1x128xf32>
    %115 = vector.extract_strided_slice %32 {offsets = [10, 0], sizes = [1, 128], strides = [1, 1]} : vector<16x128xf32> to vector<1x128xf32>
    %116 = arith.addf %114, %115 : vector<1x128xf32>
    %117 = vector.extract_strided_slice %32 {offsets = [15, 0], sizes = [1, 128], strides = [1, 1]} : vector<16x128xf32> to vector<1x128xf32>
    %118 = arith.addf %116, %117 : vector<1x128xf32>
    %119 = arith.mulf %32, %32 : vector<16x128xf32>
    %cst_14 = arith.constant dense<0.000000e+00> : vector<128xf32>
    %120 = vector.multi_reduction <add>, %119, %cst_14 [0] : vector<16x128xf32> to vector<128xf32>
    %121 = vector.shape_cast %120 : vector<128xf32> to vector<1x128xf32>
    %122 = arith.mulf %32, %111 : vector<16x128xf32>
    %cst_15 = arith.constant dense<0.000000e+00> : vector<128xf32>
    %123 = vector.multi_reduction <add>, %122, %cst_15 [0] : vector<16x128xf32> to vector<128xf32>
    %124 = vector.shape_cast %123 : vector<128xf32> to vector<1x128xf32>
    %125 = arith.mulf %111, %111 : vector<16x128xf32>
    %cst_16 = arith.constant dense<0.000000e+00> : vector<128xf32>
    %126 = vector.multi_reduction <add>, %125, %cst_16 [0] : vector<16x128xf32> to vector<128xf32>
    %127 = vector.shape_cast %126 : vector<128xf32> to vector<1x128xf32>
    %cst_17 = arith.constant 1.000000e+00 : f32
    %128 = vector.broadcast %cst_17 : f32 to vector<1x128xf32>
    %129 = arith.mulf %128, %118 : vector<1x128xf32>
    %cst_18 = arith.constant 1.000000e+00 : f32
    %130 = vector.broadcast %cst_18 : f32 to vector<1x128xf32>
    %131 = arith.mulf %129, %130 : vector<1x128xf32>
    %132 = arith.mulf %131, %118 : vector<1x128xf32>
    %133 = arith.mulf %128, %121 : vector<1x128xf32>
    %134 = arith.subf %132, %133 : vector<1x128xf32>
    %cst_19 = arith.constant 5.000000e-01 : f32
    %135 = vector.broadcast %cst_19 : f32 to vector<1x128xf32>
    %136 = arith.mulf %134, %135 : vector<1x128xf32>
    %137 = arith.mulf %136, %118 : vector<1x128xf32>
    %138 = arith.mulf %131, %121 : vector<1x128xf32>
    %139 = arith.subf %137, %138 : vector<1x128xf32>
    %140 = arith.mulf %128, %124 : vector<1x128xf32>
    %141 = arith.addf %139, %140 : vector<1x128xf32>
    %cst_20 = arith.constant 0.333333343 : f32
    %142 = vector.broadcast %cst_20 : f32 to vector<1x128xf32>
    %143 = arith.mulf %141, %142 : vector<1x128xf32>
    %144 = arith.mulf %143, %118 : vector<1x128xf32>
    %145 = arith.mulf %136, %121 : vector<1x128xf32>
    %146 = arith.subf %144, %145 : vector<1x128xf32>
    %147 = arith.mulf %131, %124 : vector<1x128xf32>
    %148 = arith.addf %146, %147 : vector<1x128xf32>
    %149 = arith.mulf %128, %127 : vector<1x128xf32>
    %150 = arith.subf %148, %149 : vector<1x128xf32>
    %cst_21 = arith.constant 2.500000e-01 : f32
    %151 = vector.broadcast %cst_21 : f32 to vector<1x128xf32>
    %152 = arith.mulf %150, %151 : vector<1x128xf32>
    %cst_22 = arith.constant 1.000000e+00 : f32
    %153 = vector.broadcast %cst_22 : f32 to vector<1x128xf32>
    %154 = arith.mulf %153, %152 : vector<1x128xf32>
    %cst_23 = arith.constant -1.000000e+00 : f32
    %155 = vector.broadcast %cst_23 : f32 to vector<1x128xf32>
    %156 = arith.mulf %155, %143 : vector<1x128xf32>
    %cst_24 = arith.constant 1.000000e+00 : f32
    %157 = vector.broadcast %cst_24 : f32 to vector<1x128xf32>
    %158 = arith.mulf %157, %136 : vector<1x128xf32>
    %cst_25 = arith.constant -1.000000e+00 : f32
    %159 = vector.broadcast %cst_25 : f32 to vector<1x128xf32>
    %160 = arith.mulf %159, %131 : vector<1x128xf32>
    %161 = math.absf %154 : vector<1x128xf32>
    %cst_26 = arith.constant 1.000000e-30 : f32
    %162 = vector.broadcast %cst_26 : f32 to vector<1x128xf32>
    %163 = arith.cmpf ogt, %161, %162 : vector<1x128xf32>
    %cst_27 = arith.constant 0.000000e+00 : f32
    %164 = vector.broadcast %cst_27 : f32 to vector<1x128xf32>
    %165 = arith.cmpf oge, %154, %164 : vector<1x128xf32>
    %cst_28 = arith.constant 1.000000e-30 : f32
    %cst_29 = arith.constant -1.000000e-30 : f32
    %166 = vector.broadcast %cst_28 : f32 to vector<1x128xf32>
    %167 = vector.broadcast %cst_29 : f32 to vector<1x128xf32>
    %168 = arith.select %165, %166, %167 : vector<1x128xi1>, vector<1x128xf32>
    %169 = arith.select %163, %154, %168 : vector<1x128xi1>, vector<1x128xf32>
    %cst_30 = arith.constant -1.000000e+00 : f32
    %170 = vector.broadcast %cst_30 : f32 to vector<1x128xf32>
    %171 = arith.divf %170, %169 : vector<1x128xf32>
    %172 = vector.extract_strided_slice %32 {offsets = [0, 0], sizes = [1, 128], strides = [1, 1]} : vector<16x128xf32> to vector<1x128xf32>
    %173 = vector.extract_strided_slice %34 {offsets = [0, 0], sizes = [1, 128], strides = [1, 1]} : vector<4x128xf32> to vector<1x128xf32>
    %174 = arith.mulf %172, %173 : vector<1x128xf32>
    %175 = vector.extract_strided_slice %32 {offsets = [1, 0], sizes = [1, 128], strides = [1, 1]} : vector<16x128xf32> to vector<1x128xf32>
    %176 = vector.extract_strided_slice %34 {offsets = [1, 0], sizes = [1, 128], strides = [1, 1]} : vector<4x128xf32> to vector<1x128xf32>
    %177 = arith.mulf %175, %176 : vector<1x128xf32>
    %178 = arith.addf %174, %177 : vector<1x128xf32>
    %179 = vector.extract_strided_slice %32 {offsets = [2, 0], sizes = [1, 128], strides = [1, 1]} : vector<16x128xf32> to vector<1x128xf32>
    %180 = vector.extract_strided_slice %34 {offsets = [2, 0], sizes = [1, 128], strides = [1, 1]} : vector<4x128xf32> to vector<1x128xf32>
    %181 = arith.mulf %179, %180 : vector<1x128xf32>
    %182 = arith.addf %178, %181 : vector<1x128xf32>
    %183 = vector.extract_strided_slice %32 {offsets = [3, 0], sizes = [1, 128], strides = [1, 1]} : vector<16x128xf32> to vector<1x128xf32>
    %184 = vector.extract_strided_slice %34 {offsets = [3, 0], sizes = [1, 128], strides = [1, 1]} : vector<4x128xf32> to vector<1x128xf32>
    %185 = arith.mulf %183, %184 : vector<1x128xf32>
    %186 = arith.addf %182, %185 : vector<1x128xf32>
    %187 = vector.extract_strided_slice %32 {offsets = [4, 0], sizes = [1, 128], strides = [1, 1]} : vector<16x128xf32> to vector<1x128xf32>
    %188 = vector.extract_strided_slice %34 {offsets = [0, 0], sizes = [1, 128], strides = [1, 1]} : vector<4x128xf32> to vector<1x128xf32>
    %189 = arith.mulf %187, %188 : vector<1x128xf32>
    %190 = vector.extract_strided_slice %32 {offsets = [5, 0], sizes = [1, 128], strides = [1, 1]} : vector<16x128xf32> to vector<1x128xf32>
    %191 = vector.extract_strided_slice %34 {offsets = [1, 0], sizes = [1, 128], strides = [1, 1]} : vector<4x128xf32> to vector<1x128xf32>
    %192 = arith.mulf %190, %191 : vector<1x128xf32>
    %193 = arith.addf %189, %192 : vector<1x128xf32>
    %194 = vector.extract_strided_slice %32 {offsets = [6, 0], sizes = [1, 128], strides = [1, 1]} : vector<16x128xf32> to vector<1x128xf32>
    %195 = vector.extract_strided_slice %34 {offsets = [2, 0], sizes = [1, 128], strides = [1, 1]} : vector<4x128xf32> to vector<1x128xf32>
    %196 = arith.mulf %194, %195 : vector<1x128xf32>
    %197 = arith.addf %193, %196 : vector<1x128xf32>
    %198 = vector.extract_strided_slice %32 {offsets = [7, 0], sizes = [1, 128], strides = [1, 1]} : vector<16x128xf32> to vector<1x128xf32>
    %199 = vector.extract_strided_slice %34 {offsets = [3, 0], sizes = [1, 128], strides = [1, 1]} : vector<4x128xf32> to vector<1x128xf32>
    %200 = arith.mulf %198, %199 : vector<1x128xf32>
    %201 = arith.addf %197, %200 : vector<1x128xf32>
    %202 = vector.extract_strided_slice %32 {offsets = [8, 0], sizes = [1, 128], strides = [1, 1]} : vector<16x128xf32> to vector<1x128xf32>
    %203 = vector.extract_strided_slice %34 {offsets = [0, 0], sizes = [1, 128], strides = [1, 1]} : vector<4x128xf32> to vector<1x128xf32>
    %204 = arith.mulf %202, %203 : vector<1x128xf32>
    %205 = vector.extract_strided_slice %32 {offsets = [9, 0], sizes = [1, 128], strides = [1, 1]} : vector<16x128xf32> to vector<1x128xf32>
    %206 = vector.extract_strided_slice %34 {offsets = [1, 0], sizes = [1, 128], strides = [1, 1]} : vector<4x128xf32> to vector<1x128xf32>
    %207 = arith.mulf %205, %206 : vector<1x128xf32>
    %208 = arith.addf %204, %207 : vector<1x128xf32>
    %209 = vector.extract_strided_slice %32 {offsets = [10, 0], sizes = [1, 128], strides = [1, 1]} : vector<16x128xf32> to vector<1x128xf32>
    %210 = vector.extract_strided_slice %34 {offsets = [2, 0], sizes = [1, 128], strides = [1, 1]} : vector<4x128xf32> to vector<1x128xf32>
    %211 = arith.mulf %209, %210 : vector<1x128xf32>
    %212 = arith.addf %208, %211 : vector<1x128xf32>
    %213 = vector.extract_strided_slice %32 {offsets = [11, 0], sizes = [1, 128], strides = [1, 1]} : vector<16x128xf32> to vector<1x128xf32>
    %214 = vector.extract_strided_slice %34 {offsets = [3, 0], sizes = [1, 128], strides = [1, 1]} : vector<4x128xf32> to vector<1x128xf32>
    %215 = arith.mulf %213, %214 : vector<1x128xf32>
    %216 = arith.addf %212, %215 : vector<1x128xf32>
    %217 = vector.extract_strided_slice %32 {offsets = [12, 0], sizes = [1, 128], strides = [1, 1]} : vector<16x128xf32> to vector<1x128xf32>
    %218 = vector.extract_strided_slice %34 {offsets = [0, 0], sizes = [1, 128], strides = [1, 1]} : vector<4x128xf32> to vector<1x128xf32>
    %219 = arith.mulf %217, %218 : vector<1x128xf32>
    %220 = vector.extract_strided_slice %32 {offsets = [13, 0], sizes = [1, 128], strides = [1, 1]} : vector<16x128xf32> to vector<1x128xf32>
    %221 = vector.extract_strided_slice %34 {offsets = [1, 0], sizes = [1, 128], strides = [1, 1]} : vector<4x128xf32> to vector<1x128xf32>
    %222 = arith.mulf %220, %221 : vector<1x128xf32>
    %223 = arith.addf %219, %222 : vector<1x128xf32>
    %224 = vector.extract_strided_slice %32 {offsets = [14, 0], sizes = [1, 128], strides = [1, 1]} : vector<16x128xf32> to vector<1x128xf32>
    %225 = vector.extract_strided_slice %34 {offsets = [2, 0], sizes = [1, 128], strides = [1, 1]} : vector<4x128xf32> to vector<1x128xf32>
    %226 = arith.mulf %224, %225 : vector<1x128xf32>
    %227 = arith.addf %223, %226 : vector<1x128xf32>
    %228 = vector.extract_strided_slice %32 {offsets = [15, 0], sizes = [1, 128], strides = [1, 1]} : vector<16x128xf32> to vector<1x128xf32>
    %229 = vector.extract_strided_slice %34 {offsets = [3, 0], sizes = [1, 128], strides = [1, 1]} : vector<4x128xf32> to vector<1x128xf32>
    %230 = arith.mulf %228, %229 : vector<1x128xf32>
    %231 = arith.addf %227, %230 : vector<1x128xf32>
    %232 = tpu.concatenate %186, %201, %216, %231 in 0 : vector<1x128xf32>, vector<1x128xf32>, vector<1x128xf32>, vector<1x128xf32> -> vector<4x128xf32>
    %233 = vector.broadcast %160 : vector<1x128xf32> to vector<4x128xf32>
    %234 = arith.mulf %233, %34 : vector<4x128xf32>
    %235 = arith.addf %232, %234 : vector<4x128xf32>
    %236 = vector.extract_strided_slice %32 {offsets = [0, 0], sizes = [1, 128], strides = [1, 1]} : vector<16x128xf32> to vector<1x128xf32>
    %237 = vector.extract_strided_slice %235 {offsets = [0, 0], sizes = [1, 128], strides = [1, 1]} : vector<4x128xf32> to vector<1x128xf32>
    %238 = arith.mulf %236, %237 : vector<1x128xf32>
    %239 = vector.extract_strided_slice %32 {offsets = [1, 0], sizes = [1, 128], strides = [1, 1]} : vector<16x128xf32> to vector<1x128xf32>
    %240 = vector.extract_strided_slice %235 {offsets = [1, 0], sizes = [1, 128], strides = [1, 1]} : vector<4x128xf32> to vector<1x128xf32>
    %241 = arith.mulf %239, %240 : vector<1x128xf32>
    %242 = arith.addf %238, %241 : vector<1x128xf32>
    %243 = vector.extract_strided_slice %32 {offsets = [2, 0], sizes = [1, 128], strides = [1, 1]} : vector<16x128xf32> to vector<1x128xf32>
    %244 = vector.extract_strided_slice %235 {offsets = [2, 0], sizes = [1, 128], strides = [1, 1]} : vector<4x128xf32> to vector<1x128xf32>
    %245 = arith.mulf %243, %244 : vector<1x128xf32>
    %246 = arith.addf %242, %245 : vector<1x128xf32>
    %247 = vector.extract_strided_slice %32 {offsets = [3, 0], sizes = [1, 128], strides = [1, 1]} : vector<16x128xf32> to vector<1x128xf32>
    %248 = vector.extract_strided_slice %235 {offsets = [3, 0], sizes = [1, 128], strides = [1, 1]} : vector<4x128xf32> to vector<1x128xf32>
    %249 = arith.mulf %247, %248 : vector<1x128xf32>
    %250 = arith.addf %246, %249 : vector<1x128xf32>
    %251 = vector.extract_strided_slice %32 {offsets = [4, 0], sizes = [1, 128], strides = [1, 1]} : vector<16x128xf32> to vector<1x128xf32>
    %252 = vector.extract_strided_slice %235 {offsets = [0, 0], sizes = [1, 128], strides = [1, 1]} : vector<4x128xf32> to vector<1x128xf32>
    %253 = arith.mulf %251, %252 : vector<1x128xf32>
    %254 = vector.extract_strided_slice %32 {offsets = [5, 0], sizes = [1, 128], strides = [1, 1]} : vector<16x128xf32> to vector<1x128xf32>
    %255 = vector.extract_strided_slice %235 {offsets = [1, 0], sizes = [1, 128], strides = [1, 1]} : vector<4x128xf32> to vector<1x128xf32>
    %256 = arith.mulf %254, %255 : vector<1x128xf32>
    %257 = arith.addf %253, %256 : vector<1x128xf32>
    %258 = vector.extract_strided_slice %32 {offsets = [6, 0], sizes = [1, 128], strides = [1, 1]} : vector<16x128xf32> to vector<1x128xf32>
    %259 = vector.extract_strided_slice %235 {offsets = [2, 0], sizes = [1, 128], strides = [1, 1]} : vector<4x128xf32> to vector<1x128xf32>
    %260 = arith.mulf %258, %259 : vector<1x128xf32>
    %261 = arith.addf %257, %260 : vector<1x128xf32>
    %262 = vector.extract_strided_slice %32 {offsets = [7, 0], sizes = [1, 128], strides = [1, 1]} : vector<16x128xf32> to vector<1x128xf32>
    %263 = vector.extract_strided_slice %235 {offsets = [3, 0], sizes = [1, 128], strides = [1, 1]} : vector<4x128xf32> to vector<1x128xf32>
    %264 = arith.mulf %262, %263 : vector<1x128xf32>
    %265 = arith.addf %261, %264 : vector<1x128xf32>
    %266 = vector.extract_strided_slice %32 {offsets = [8, 0], sizes = [1, 128], strides = [1, 1]} : vector<16x128xf32> to vector<1x128xf32>
    %267 = vector.extract_strided_slice %235 {offsets = [0, 0], sizes = [1, 128], strides = [1, 1]} : vector<4x128xf32> to vector<1x128xf32>
    %268 = arith.mulf %266, %267 : vector<1x128xf32>
    %269 = vector.extract_strided_slice %32 {offsets = [9, 0], sizes = [1, 128], strides = [1, 1]} : vector<16x128xf32> to vector<1x128xf32>
    %270 = vector.extract_strided_slice %235 {offsets = [1, 0], sizes = [1, 128], strides = [1, 1]} : vector<4x128xf32> to vector<1x128xf32>
    %271 = arith.mulf %269, %270 : vector<1x128xf32>
    %272 = arith.addf %268, %271 : vector<1x128xf32>
    %273 = vector.extract_strided_slice %32 {offsets = [10, 0], sizes = [1, 128], strides = [1, 1]} : vector<16x128xf32> to vector<1x128xf32>
    %274 = vector.extract_strided_slice %235 {offsets = [2, 0], sizes = [1, 128], strides = [1, 1]} : vector<4x128xf32> to vector<1x128xf32>
    %275 = arith.mulf %273, %274 : vector<1x128xf32>
    %276 = arith.addf %272, %275 : vector<1x128xf32>
    %277 = vector.extract_strided_slice %32 {offsets = [11, 0], sizes = [1, 128], strides = [1, 1]} : vector<16x128xf32> to vector<1x128xf32>
    %278 = vector.extract_strided_slice %235 {offsets = [3, 0], sizes = [1, 128], strides = [1, 1]} : vector<4x128xf32> to vector<1x128xf32>
    %279 = arith.mulf %277, %278 : vector<1x128xf32>
    %280 = arith.addf %276, %279 : vector<1x128xf32>
    %281 = vector.extract_strided_slice %32 {offsets = [12, 0], sizes = [1, 128], strides = [1, 1]} : vector<16x128xf32> to vector<1x128xf32>
    %282 = vector.extract_strided_slice %235 {offsets = [0, 0], sizes = [1, 128], strides = [1, 1]} : vector<4x128xf32> to vector<1x128xf32>
    %283 = arith.mulf %281, %282 : vector<1x128xf32>
    %284 = vector.extract_strided_slice %32 {offsets = [13, 0], sizes = [1, 128], strides = [1, 1]} : vector<16x128xf32> to vector<1x128xf32>
    %285 = vector.extract_strided_slice %235 {offsets = [1, 0], sizes = [1, 128], strides = [1, 1]} : vector<4x128xf32> to vector<1x128xf32>
    %286 = arith.mulf %284, %285 : vector<1x128xf32>
    %287 = arith.addf %283, %286 : vector<1x128xf32>
    %288 = vector.extract_strided_slice %32 {offsets = [14, 0], sizes = [1, 128], strides = [1, 1]} : vector<16x128xf32> to vector<1x128xf32>
    %289 = vector.extract_strided_slice %235 {offsets = [2, 0], sizes = [1, 128], strides = [1, 1]} : vector<4x128xf32> to vector<1x128xf32>
    %290 = arith.mulf %288, %289 : vector<1x128xf32>
    %291 = arith.addf %287, %290 : vector<1x128xf32>
    %292 = vector.extract_strided_slice %32 {offsets = [15, 0], sizes = [1, 128], strides = [1, 1]} : vector<16x128xf32> to vector<1x128xf32>
    %293 = vector.extract_strided_slice %235 {offsets = [3, 0], sizes = [1, 128], strides = [1, 1]} : vector<4x128xf32> to vector<1x128xf32>
    %294 = arith.mulf %292, %293 : vector<1x128xf32>
    %295 = arith.addf %291, %294 : vector<1x128xf32>
    %296 = tpu.concatenate %250, %265, %280, %295 in 0 : vector<1x128xf32>, vector<1x128xf32>, vector<1x128xf32>, vector<1x128xf32> -> vector<4x128xf32>
    %297 = vector.broadcast %158 : vector<1x128xf32> to vector<4x128xf32>
    %298 = arith.mulf %297, %34 : vector<4x128xf32>
    %299 = arith.addf %296, %298 : vector<4x128xf32>
    %300 = vector.extract_strided_slice %32 {offsets = [0, 0], sizes = [1, 128], strides = [1, 1]} : vector<16x128xf32> to vector<1x128xf32>
    %301 = vector.extract_strided_slice %299 {offsets = [0, 0], sizes = [1, 128], strides = [1, 1]} : vector<4x128xf32> to vector<1x128xf32>
    %302 = arith.mulf %300, %301 : vector<1x128xf32>
    %303 = vector.extract_strided_slice %32 {offsets = [1, 0], sizes = [1, 128], strides = [1, 1]} : vector<16x128xf32> to vector<1x128xf32>
    %304 = vector.extract_strided_slice %299 {offsets = [1, 0], sizes = [1, 128], strides = [1, 1]} : vector<4x128xf32> to vector<1x128xf32>
    %305 = arith.mulf %303, %304 : vector<1x128xf32>
    %306 = arith.addf %302, %305 : vector<1x128xf32>
    %307 = vector.extract_strided_slice %32 {offsets = [2, 0], sizes = [1, 128], strides = [1, 1]} : vector<16x128xf32> to vector<1x128xf32>
    %308 = vector.extract_strided_slice %299 {offsets = [2, 0], sizes = [1, 128], strides = [1, 1]} : vector<4x128xf32> to vector<1x128xf32>
    %309 = arith.mulf %307, %308 : vector<1x128xf32>
    %310 = arith.addf %306, %309 : vector<1x128xf32>
    %311 = vector.extract_strided_slice %32 {offsets = [3, 0], sizes = [1, 128], strides = [1, 1]} : vector<16x128xf32> to vector<1x128xf32>
    %312 = vector.extract_strided_slice %299 {offsets = [3, 0], sizes = [1, 128], strides = [1, 1]} : vector<4x128xf32> to vector<1x128xf32>
    %313 = arith.mulf %311, %312 : vector<1x128xf32>
    %314 = arith.addf %310, %313 : vector<1x128xf32>
    %315 = vector.extract_strided_slice %32 {offsets = [4, 0], sizes = [1, 128], strides = [1, 1]} : vector<16x128xf32> to vector<1x128xf32>
    %316 = vector.extract_strided_slice %299 {offsets = [0, 0], sizes = [1, 128], strides = [1, 1]} : vector<4x128xf32> to vector<1x128xf32>
    %317 = arith.mulf %315, %316 : vector<1x128xf32>
    %318 = vector.extract_strided_slice %32 {offsets = [5, 0], sizes = [1, 128], strides = [1, 1]} : vector<16x128xf32> to vector<1x128xf32>
    %319 = vector.extract_strided_slice %299 {offsets = [1, 0], sizes = [1, 128], strides = [1, 1]} : vector<4x128xf32> to vector<1x128xf32>
    %320 = arith.mulf %318, %319 : vector<1x128xf32>
    %321 = arith.addf %317, %320 : vector<1x128xf32>
    %322 = vector.extract_strided_slice %32 {offsets = [6, 0], sizes = [1, 128], strides = [1, 1]} : vector<16x128xf32> to vector<1x128xf32>
    %323 = vector.extract_strided_slice %299 {offsets = [2, 0], sizes = [1, 128], strides = [1, 1]} : vector<4x128xf32> to vector<1x128xf32>
    %324 = arith.mulf %322, %323 : vector<1x128xf32>
    %325 = arith.addf %321, %324 : vector<1x128xf32>
    %326 = vector.extract_strided_slice %32 {offsets = [7, 0], sizes = [1, 128], strides = [1, 1]} : vector<16x128xf32> to vector<1x128xf32>
    %327 = vector.extract_strided_slice %299 {offsets = [3, 0], sizes = [1, 128], strides = [1, 1]} : vector<4x128xf32> to vector<1x128xf32>
    %328 = arith.mulf %326, %327 : vector<1x128xf32>
    %329 = arith.addf %325, %328 : vector<1x128xf32>
    %330 = vector.extract_strided_slice %32 {offsets = [8, 0], sizes = [1, 128], strides = [1, 1]} : vector<16x128xf32> to vector<1x128xf32>
    %331 = vector.extract_strided_slice %299 {offsets = [0, 0], sizes = [1, 128], strides = [1, 1]} : vector<4x128xf32> to vector<1x128xf32>
    %332 = arith.mulf %330, %331 : vector<1x128xf32>
    %333 = vector.extract_strided_slice %32 {offsets = [9, 0], sizes = [1, 128], strides = [1, 1]} : vector<16x128xf32> to vector<1x128xf32>
    %334 = vector.extract_strided_slice %299 {offsets = [1, 0], sizes = [1, 128], strides = [1, 1]} : vector<4x128xf32> to vector<1x128xf32>
    %335 = arith.mulf %333, %334 : vector<1x128xf32>
    %336 = arith.addf %332, %335 : vector<1x128xf32>
    %337 = vector.extract_strided_slice %32 {offsets = [10, 0], sizes = [1, 128], strides = [1, 1]} : vector<16x128xf32> to vector<1x128xf32>
    %338 = vector.extract_strided_slice %299 {offsets = [2, 0], sizes = [1, 128], strides = [1, 1]} : vector<4x128xf32> to vector<1x128xf32>
    %339 = arith.mulf %337, %338 : vector<1x128xf32>
    %340 = arith.addf %336, %339 : vector<1x128xf32>
    %341 = vector.extract_strided_slice %32 {offsets = [11, 0], sizes = [1, 128], strides = [1, 1]} : vector<16x128xf32> to vector<1x128xf32>
    %342 = vector.extract_strided_slice %299 {offsets = [3, 0], sizes = [1, 128], strides = [1, 1]} : vector<4x128xf32> to vector<1x128xf32>
    %343 = arith.mulf %341, %342 : vector<1x128xf32>
    %344 = arith.addf %340, %343 : vector<1x128xf32>
    %345 = vector.extract_strided_slice %32 {offsets = [12, 0], sizes = [1, 128], strides = [1, 1]} : vector<16x128xf32> to vector<1x128xf32>
    %346 = vector.extract_strided_slice %299 {offsets = [0, 0], sizes = [1, 128], strides = [1, 1]} : vector<4x128xf32> to vector<1x128xf32>
    %347 = arith.mulf %345, %346 : vector<1x128xf32>
    %348 = vector.extract_strided_slice %32 {offsets = [13, 0], sizes = [1, 128], strides = [1, 1]} : vector<16x128xf32> to vector<1x128xf32>
    %349 = vector.extract_strided_slice %299 {offsets = [1, 0], sizes = [1, 128], strides = [1, 1]} : vector<4x128xf32> to vector<1x128xf32>
    %350 = arith.mulf %348, %349 : vector<1x128xf32>
    %351 = arith.addf %347, %350 : vector<1x128xf32>
    %352 = vector.extract_strided_slice %32 {offsets = [14, 0], sizes = [1, 128], strides = [1, 1]} : vector<16x128xf32> to vector<1x128xf32>
    %353 = vector.extract_strided_slice %299 {offsets = [2, 0], sizes = [1, 128], strides = [1, 1]} : vector<4x128xf32> to vector<1x128xf32>
    %354 = arith.mulf %352, %353 : vector<1x128xf32>
    %355 = arith.addf %351, %354 : vector<1x128xf32>
    %356 = vector.extract_strided_slice %32 {offsets = [15, 0], sizes = [1, 128], strides = [1, 1]} : vector<16x128xf32> to vector<1x128xf32>
    %357 = vector.extract_strided_slice %299 {offsets = [3, 0], sizes = [1, 128], strides = [1, 1]} : vector<4x128xf32> to vector<1x128xf32>
    %358 = arith.mulf %356, %357 : vector<1x128xf32>
    %359 = arith.addf %355, %358 : vector<1x128xf32>
    %360 = tpu.concatenate %314, %329, %344, %359 in 0 : vector<1x128xf32>, vector<1x128xf32>, vector<1x128xf32>, vector<1x128xf32> -> vector<4x128xf32>
    %361 = vector.broadcast %156 : vector<1x128xf32> to vector<4x128xf32>
    %362 = arith.mulf %361, %34 : vector<4x128xf32>
    %363 = arith.addf %360, %362 : vector<4x128xf32>
    %364 = vector.broadcast %171 : vector<1x128xf32> to vector<4x128xf32>
    %365 = arith.mulf %363, %364 : vector<4x128xf32>
    %366 = vector.extract_strided_slice %32 {offsets = [0, 0], sizes = [1, 128], strides = [1, 1]} : vector<16x128xf32> to vector<1x128xf32>
    %367 = vector.extract_strided_slice %365 {offsets = [0, 0], sizes = [1, 128], strides = [1, 1]} : vector<4x128xf32> to vector<1x128xf32>
    %368 = arith.mulf %366, %367 : vector<1x128xf32>
    %369 = vector.extract_strided_slice %32 {offsets = [1, 0], sizes = [1, 128], strides = [1, 1]} : vector<16x128xf32> to vector<1x128xf32>
    %370 = vector.extract_strided_slice %365 {offsets = [1, 0], sizes = [1, 128], strides = [1, 1]} : vector<4x128xf32> to vector<1x128xf32>
    %371 = arith.mulf %369, %370 : vector<1x128xf32>
    %372 = arith.addf %368, %371 : vector<1x128xf32>
    %373 = vector.extract_strided_slice %32 {offsets = [2, 0], sizes = [1, 128], strides = [1, 1]} : vector<16x128xf32> to vector<1x128xf32>
    %374 = vector.extract_strided_slice %365 {offsets = [2, 0], sizes = [1, 128], strides = [1, 1]} : vector<4x128xf32> to vector<1x128xf32>
    %375 = arith.mulf %373, %374 : vector<1x128xf32>
    %376 = arith.addf %372, %375 : vector<1x128xf32>
    %377 = vector.extract_strided_slice %32 {offsets = [3, 0], sizes = [1, 128], strides = [1, 1]} : vector<16x128xf32> to vector<1x128xf32>
    %378 = vector.extract_strided_slice %365 {offsets = [3, 0], sizes = [1, 128], strides = [1, 1]} : vector<4x128xf32> to vector<1x128xf32>
    %379 = arith.mulf %377, %378 : vector<1x128xf32>
    %380 = arith.addf %376, %379 : vector<1x128xf32>
    %381 = vector.extract_strided_slice %32 {offsets = [4, 0], sizes = [1, 128], strides = [1, 1]} : vector<16x128xf32> to vector<1x128xf32>
    %382 = vector.extract_strided_slice %365 {offsets = [0, 0], sizes = [1, 128], strides = [1, 1]} : vector<4x128xf32> to vector<1x128xf32>
    %383 = arith.mulf %381, %382 : vector<1x128xf32>
    %384 = vector.extract_strided_slice %32 {offsets = [5, 0], sizes = [1, 128], strides = [1, 1]} : vector<16x128xf32> to vector<1x128xf32>
    %385 = vector.extract_strided_slice %365 {offsets = [1, 0], sizes = [1, 128], strides = [1, 1]} : vector<4x128xf32> to vector<1x128xf32>
    %386 = arith.mulf %384, %385 : vector<1x128xf32>
    %387 = arith.addf %383, %386 : vector<1x128xf32>
    %388 = vector.extract_strided_slice %32 {offsets = [6, 0], sizes = [1, 128], strides = [1, 1]} : vector<16x128xf32> to vector<1x128xf32>
    %389 = vector.extract_strided_slice %365 {offsets = [2, 0], sizes = [1, 128], strides = [1, 1]} : vector<4x128xf32> to vector<1x128xf32>
    %390 = arith.mulf %388, %389 : vector<1x128xf32>
    %391 = arith.addf %387, %390 : vector<1x128xf32>
    %392 = vector.extract_strided_slice %32 {offsets = [7, 0], sizes = [1, 128], strides = [1, 1]} : vector<16x128xf32> to vector<1x128xf32>
    %393 = vector.extract_strided_slice %365 {offsets = [3, 0], sizes = [1, 128], strides = [1, 1]} : vector<4x128xf32> to vector<1x128xf32>
    %394 = arith.mulf %392, %393 : vector<1x128xf32>
    %395 = arith.addf %391, %394 : vector<1x128xf32>
    %396 = vector.extract_strided_slice %32 {offsets = [8, 0], sizes = [1, 128], strides = [1, 1]} : vector<16x128xf32> to vector<1x128xf32>
    %397 = vector.extract_strided_slice %365 {offsets = [0, 0], sizes = [1, 128], strides = [1, 1]} : vector<4x128xf32> to vector<1x128xf32>
    %398 = arith.mulf %396, %397 : vector<1x128xf32>
    %399 = vector.extract_strided_slice %32 {offsets = [9, 0], sizes = [1, 128], strides = [1, 1]} : vector<16x128xf32> to vector<1x128xf32>
    %400 = vector.extract_strided_slice %365 {offsets = [1, 0], sizes = [1, 128], strides = [1, 1]} : vector<4x128xf32> to vector<1x128xf32>
    %401 = arith.mulf %399, %400 : vector<1x128xf32>
    %402 = arith.addf %398, %401 : vector<1x128xf32>
    %403 = vector.extract_strided_slice %32 {offsets = [10, 0], sizes = [1, 128], strides = [1, 1]} : vector<16x128xf32> to vector<1x128xf32>
    %404 = vector.extract_strided_slice %365 {offsets = [2, 0], sizes = [1, 128], strides = [1, 1]} : vector<4x128xf32> to vector<1x128xf32>
    %405 = arith.mulf %403, %404 : vector<1x128xf32>
    %406 = arith.addf %402, %405 : vector<1x128xf32>
    %407 = vector.extract_strided_slice %32 {offsets = [11, 0], sizes = [1, 128], strides = [1, 1]} : vector<16x128xf32> to vector<1x128xf32>
    %408 = vector.extract_strided_slice %365 {offsets = [3, 0], sizes = [1, 128], strides = [1, 1]} : vector<4x128xf32> to vector<1x128xf32>
    %409 = arith.mulf %407, %408 : vector<1x128xf32>
    %410 = arith.addf %406, %409 : vector<1x128xf32>
    %411 = vector.extract_strided_slice %32 {offsets = [12, 0], sizes = [1, 128], strides = [1, 1]} : vector<16x128xf32> to vector<1x128xf32>
    %412 = vector.extract_strided_slice %365 {offsets = [0, 0], sizes = [1, 128], strides = [1, 1]} : vector<4x128xf32> to vector<1x128xf32>
    %413 = arith.mulf %411, %412 : vector<1x128xf32>
    %414 = vector.extract_strided_slice %32 {offsets = [13, 0], sizes = [1, 128], strides = [1, 1]} : vector<16x128xf32> to vector<1x128xf32>
    %415 = vector.extract_strided_slice %365 {offsets = [1, 0], sizes = [1, 128], strides = [1, 1]} : vector<4x128xf32> to vector<1x128xf32>
    %416 = arith.mulf %414, %415 : vector<1x128xf32>
    %417 = arith.addf %413, %416 : vector<1x128xf32>
    %418 = vector.extract_strided_slice %32 {offsets = [14, 0], sizes = [1, 128], strides = [1, 1]} : vector<16x128xf32> to vector<1x128xf32>
    %419 = vector.extract_strided_slice %365 {offsets = [2, 0], sizes = [1, 128], strides = [1, 1]} : vector<4x128xf32> to vector<1x128xf32>
    %420 = arith.mulf %418, %419 : vector<1x128xf32>
    %421 = arith.addf %417, %420 : vector<1x128xf32>
    %422 = vector.extract_strided_slice %32 {offsets = [15, 0], sizes = [1, 128], strides = [1, 1]} : vector<16x128xf32> to vector<1x128xf32>
    %423 = vector.extract_strided_slice %365 {offsets = [3, 0], sizes = [1, 128], strides = [1, 1]} : vector<4x128xf32> to vector<1x128xf32>
    %424 = arith.mulf %422, %423 : vector<1x128xf32>
    %425 = arith.addf %421, %424 : vector<1x128xf32>
    %426 = tpu.concatenate %380, %395, %410, %425 in 0 : vector<1x128xf32>, vector<1x128xf32>, vector<1x128xf32>, vector<1x128xf32> -> vector<4x128xf32>
    %427 = arith.subf %34, %426 : vector<4x128xf32>
    %428 = vector.extract_strided_slice %32 {offsets = [0, 0], sizes = [1, 128], strides = [1, 1]} : vector<16x128xf32> to vector<1x128xf32>
    %429 = vector.extract_strided_slice %427 {offsets = [0, 0], sizes = [1, 128], strides = [1, 1]} : vector<4x128xf32> to vector<1x128xf32>
    %430 = arith.mulf %428, %429 : vector<1x128xf32>
    %431 = vector.extract_strided_slice %32 {offsets = [1, 0], sizes = [1, 128], strides = [1, 1]} : vector<16x128xf32> to vector<1x128xf32>
    %432 = vector.extract_strided_slice %427 {offsets = [1, 0], sizes = [1, 128], strides = [1, 1]} : vector<4x128xf32> to vector<1x128xf32>
    %433 = arith.mulf %431, %432 : vector<1x128xf32>
    %434 = arith.addf %430, %433 : vector<1x128xf32>
    %435 = vector.extract_strided_slice %32 {offsets = [2, 0], sizes = [1, 128], strides = [1, 1]} : vector<16x128xf32> to vector<1x128xf32>
    %436 = vector.extract_strided_slice %427 {offsets = [2, 0], sizes = [1, 128], strides = [1, 1]} : vector<4x128xf32> to vector<1x128xf32>
    %437 = arith.mulf %435, %436 : vector<1x128xf32>
    %438 = arith.addf %434, %437 : vector<1x128xf32>
    %439 = vector.extract_strided_slice %32 {offsets = [3, 0], sizes = [1, 128], strides = [1, 1]} : vector<16x128xf32> to vector<1x128xf32>
    %440 = vector.extract_strided_slice %427 {offsets = [3, 0], sizes = [1, 128], strides = [1, 1]} : vector<4x128xf32> to vector<1x128xf32>
    %441 = arith.mulf %439, %440 : vector<1x128xf32>
    %442 = arith.addf %438, %441 : vector<1x128xf32>
    %443 = vector.extract_strided_slice %32 {offsets = [4, 0], sizes = [1, 128], strides = [1, 1]} : vector<16x128xf32> to vector<1x128xf32>
    %444 = vector.extract_strided_slice %427 {offsets = [0, 0], sizes = [1, 128], strides = [1, 1]} : vector<4x128xf32> to vector<1x128xf32>
    %445 = arith.mulf %443, %444 : vector<1x128xf32>
    %446 = vector.extract_strided_slice %32 {offsets = [5, 0], sizes = [1, 128], strides = [1, 1]} : vector<16x128xf32> to vector<1x128xf32>
    %447 = vector.extract_strided_slice %427 {offsets = [1, 0], sizes = [1, 128], strides = [1, 1]} : vector<4x128xf32> to vector<1x128xf32>
    %448 = arith.mulf %446, %447 : vector<1x128xf32>
    %449 = arith.addf %445, %448 : vector<1x128xf32>
    %450 = vector.extract_strided_slice %32 {offsets = [6, 0], sizes = [1, 128], strides = [1, 1]} : vector<16x128xf32> to vector<1x128xf32>
    %451 = vector.extract_strided_slice %427 {offsets = [2, 0], sizes = [1, 128], strides = [1, 1]} : vector<4x128xf32> to vector<1x128xf32>
    %452 = arith.mulf %450, %451 : vector<1x128xf32>
    %453 = arith.addf %449, %452 : vector<1x128xf32>
    %454 = vector.extract_strided_slice %32 {offsets = [7, 0], sizes = [1, 128], strides = [1, 1]} : vector<16x128xf32> to vector<1x128xf32>
    %455 = vector.extract_strided_slice %427 {offsets = [3, 0], sizes = [1, 128], strides = [1, 1]} : vector<4x128xf32> to vector<1x128xf32>
    %456 = arith.mulf %454, %455 : vector<1x128xf32>
    %457 = arith.addf %453, %456 : vector<1x128xf32>
    %458 = vector.extract_strided_slice %32 {offsets = [8, 0], sizes = [1, 128], strides = [1, 1]} : vector<16x128xf32> to vector<1x128xf32>
    %459 = vector.extract_strided_slice %427 {offsets = [0, 0], sizes = [1, 128], strides = [1, 1]} : vector<4x128xf32> to vector<1x128xf32>
    %460 = arith.mulf %458, %459 : vector<1x128xf32>
    %461 = vector.extract_strided_slice %32 {offsets = [9, 0], sizes = [1, 128], strides = [1, 1]} : vector<16x128xf32> to vector<1x128xf32>
    %462 = vector.extract_strided_slice %427 {offsets = [1, 0], sizes = [1, 128], strides = [1, 1]} : vector<4x128xf32> to vector<1x128xf32>
    %463 = arith.mulf %461, %462 : vector<1x128xf32>
    %464 = arith.addf %460, %463 : vector<1x128xf32>
    %465 = vector.extract_strided_slice %32 {offsets = [10, 0], sizes = [1, 128], strides = [1, 1]} : vector<16x128xf32> to vector<1x128xf32>
    %466 = vector.extract_strided_slice %427 {offsets = [2, 0], sizes = [1, 128], strides = [1, 1]} : vector<4x128xf32> to vector<1x128xf32>
    %467 = arith.mulf %465, %466 : vector<1x128xf32>
    %468 = arith.addf %464, %467 : vector<1x128xf32>
    %469 = vector.extract_strided_slice %32 {offsets = [11, 0], sizes = [1, 128], strides = [1, 1]} : vector<16x128xf32> to vector<1x128xf32>
    %470 = vector.extract_strided_slice %427 {offsets = [3, 0], sizes = [1, 128], strides = [1, 1]} : vector<4x128xf32> to vector<1x128xf32>
    %471 = arith.mulf %469, %470 : vector<1x128xf32>
    %472 = arith.addf %468, %471 : vector<1x128xf32>
    %473 = vector.extract_strided_slice %32 {offsets = [12, 0], sizes = [1, 128], strides = [1, 1]} : vector<16x128xf32> to vector<1x128xf32>
    %474 = vector.extract_strided_slice %427 {offsets = [0, 0], sizes = [1, 128], strides = [1, 1]} : vector<4x128xf32> to vector<1x128xf32>
    %475 = arith.mulf %473, %474 : vector<1x128xf32>
    %476 = vector.extract_strided_slice %32 {offsets = [13, 0], sizes = [1, 128], strides = [1, 1]} : vector<16x128xf32> to vector<1x128xf32>
    %477 = vector.extract_strided_slice %427 {offsets = [1, 0], sizes = [1, 128], strides = [1, 1]} : vector<4x128xf32> to vector<1x128xf32>
    %478 = arith.mulf %476, %477 : vector<1x128xf32>
    %479 = arith.addf %475, %478 : vector<1x128xf32>
    %480 = vector.extract_strided_slice %32 {offsets = [14, 0], sizes = [1, 128], strides = [1, 1]} : vector<16x128xf32> to vector<1x128xf32>
    %481 = vector.extract_strided_slice %427 {offsets = [2, 0], sizes = [1, 128], strides = [1, 1]} : vector<4x128xf32> to vector<1x128xf32>
    %482 = arith.mulf %480, %481 : vector<1x128xf32>
    %483 = arith.addf %479, %482 : vector<1x128xf32>
    %484 = vector.extract_strided_slice %32 {offsets = [15, 0], sizes = [1, 128], strides = [1, 1]} : vector<16x128xf32> to vector<1x128xf32>
    %485 = vector.extract_strided_slice %427 {offsets = [3, 0], sizes = [1, 128], strides = [1, 1]} : vector<4x128xf32> to vector<1x128xf32>
    %486 = arith.mulf %484, %485 : vector<1x128xf32>
    %487 = arith.addf %483, %486 : vector<1x128xf32>
    %488 = tpu.concatenate %442, %457, %472, %487 in 0 : vector<1x128xf32>, vector<1x128xf32>, vector<1x128xf32>, vector<1x128xf32> -> vector<4x128xf32>
    %489 = vector.broadcast %160 : vector<1x128xf32> to vector<4x128xf32>
    %490 = arith.mulf %489, %427 : vector<4x128xf32>
    %491 = arith.addf %488, %490 : vector<4x128xf32>
    %492 = vector.extract_strided_slice %32 {offsets = [0, 0], sizes = [1, 128], strides = [1, 1]} : vector<16x128xf32> to vector<1x128xf32>
    %493 = vector.extract_strided_slice %491 {offsets = [0, 0], sizes = [1, 128], strides = [1, 1]} : vector<4x128xf32> to vector<1x128xf32>
    %494 = arith.mulf %492, %493 : vector<1x128xf32>
    %495 = vector.extract_strided_slice %32 {offsets = [1, 0], sizes = [1, 128], strides = [1, 1]} : vector<16x128xf32> to vector<1x128xf32>
    %496 = vector.extract_strided_slice %491 {offsets = [1, 0], sizes = [1, 128], strides = [1, 1]} : vector<4x128xf32> to vector<1x128xf32>
    %497 = arith.mulf %495, %496 : vector<1x128xf32>
    %498 = arith.addf %494, %497 : vector<1x128xf32>
    %499 = vector.extract_strided_slice %32 {offsets = [2, 0], sizes = [1, 128], strides = [1, 1]} : vector<16x128xf32> to vector<1x128xf32>
    %500 = vector.extract_strided_slice %491 {offsets = [2, 0], sizes = [1, 128], strides = [1, 1]} : vector<4x128xf32> to vector<1x128xf32>
    %501 = arith.mulf %499, %500 : vector<1x128xf32>
    %502 = arith.addf %498, %501 : vector<1x128xf32>
    %503 = vector.extract_strided_slice %32 {offsets = [3, 0], sizes = [1, 128], strides = [1, 1]} : vector<16x128xf32> to vector<1x128xf32>
    %504 = vector.extract_strided_slice %491 {offsets = [3, 0], sizes = [1, 128], strides = [1, 1]} : vector<4x128xf32> to vector<1x128xf32>
    %505 = arith.mulf %503, %504 : vector<1x128xf32>
    %506 = arith.addf %502, %505 : vector<1x128xf32>
    %507 = vector.extract_strided_slice %32 {offsets = [4, 0], sizes = [1, 128], strides = [1, 1]} : vector<16x128xf32> to vector<1x128xf32>
    %508 = vector.extract_strided_slice %491 {offsets = [0, 0], sizes = [1, 128], strides = [1, 1]} : vector<4x128xf32> to vector<1x128xf32>
    %509 = arith.mulf %507, %508 : vector<1x128xf32>
    %510 = vector.extract_strided_slice %32 {offsets = [5, 0], sizes = [1, 128], strides = [1, 1]} : vector<16x128xf32> to vector<1x128xf32>
    %511 = vector.extract_strided_slice %491 {offsets = [1, 0], sizes = [1, 128], strides = [1, 1]} : vector<4x128xf32> to vector<1x128xf32>
    %512 = arith.mulf %510, %511 : vector<1x128xf32>
    %513 = arith.addf %509, %512 : vector<1x128xf32>
    %514 = vector.extract_strided_slice %32 {offsets = [6, 0], sizes = [1, 128], strides = [1, 1]} : vector<16x128xf32> to vector<1x128xf32>
    %515 = vector.extract_strided_slice %491 {offsets = [2, 0], sizes = [1, 128], strides = [1, 1]} : vector<4x128xf32> to vector<1x128xf32>
    %516 = arith.mulf %514, %515 : vector<1x128xf32>
    %517 = arith.addf %513, %516 : vector<1x128xf32>
    %518 = vector.extract_strided_slice %32 {offsets = [7, 0], sizes = [1, 128], strides = [1, 1]} : vector<16x128xf32> to vector<1x128xf32>
    %519 = vector.extract_strided_slice %491 {offsets = [3, 0], sizes = [1, 128], strides = [1, 1]} : vector<4x128xf32> to vector<1x128xf32>
    %520 = arith.mulf %518, %519 : vector<1x128xf32>
    %521 = arith.addf %517, %520 : vector<1x128xf32>
    %522 = vector.extract_strided_slice %32 {offsets = [8, 0], sizes = [1, 128], strides = [1, 1]} : vector<16x128xf32> to vector<1x128xf32>
    %523 = vector.extract_strided_slice %491 {offsets = [0, 0], sizes = [1, 128], strides = [1, 1]} : vector<4x128xf32> to vector<1x128xf32>
    %524 = arith.mulf %522, %523 : vector<1x128xf32>
    %525 = vector.extract_strided_slice %32 {offsets = [9, 0], sizes = [1, 128], strides = [1, 1]} : vector<16x128xf32> to vector<1x128xf32>
    %526 = vector.extract_strided_slice %491 {offsets = [1, 0], sizes = [1, 128], strides = [1, 1]} : vector<4x128xf32> to vector<1x128xf32>
    %527 = arith.mulf %525, %526 : vector<1x128xf32>
    %528 = arith.addf %524, %527 : vector<1x128xf32>
    %529 = vector.extract_strided_slice %32 {offsets = [10, 0], sizes = [1, 128], strides = [1, 1]} : vector<16x128xf32> to vector<1x128xf32>
    %530 = vector.extract_strided_slice %491 {offsets = [2, 0], sizes = [1, 128], strides = [1, 1]} : vector<4x128xf32> to vector<1x128xf32>
    %531 = arith.mulf %529, %530 : vector<1x128xf32>
    %532 = arith.addf %528, %531 : vector<1x128xf32>
    %533 = vector.extract_strided_slice %32 {offsets = [11, 0], sizes = [1, 128], strides = [1, 1]} : vector<16x128xf32> to vector<1x128xf32>
    %534 = vector.extract_strided_slice %491 {offsets = [3, 0], sizes = [1, 128], strides = [1, 1]} : vector<4x128xf32> to vector<1x128xf32>
    %535 = arith.mulf %533, %534 : vector<1x128xf32>
    %536 = arith.addf %532, %535 : vector<1x128xf32>
    %537 = vector.extract_strided_slice %32 {offsets = [12, 0], sizes = [1, 128], strides = [1, 1]} : vector<16x128xf32> to vector<1x128xf32>
    %538 = vector.extract_strided_slice %491 {offsets = [0, 0], sizes = [1, 128], strides = [1, 1]} : vector<4x128xf32> to vector<1x128xf32>
    %539 = arith.mulf %537, %538 : vector<1x128xf32>
    %540 = vector.extract_strided_slice %32 {offsets = [13, 0], sizes = [1, 128], strides = [1, 1]} : vector<16x128xf32> to vector<1x128xf32>
    %541 = vector.extract_strided_slice %491 {offsets = [1, 0], sizes = [1, 128], strides = [1, 1]} : vector<4x128xf32> to vector<1x128xf32>
    %542 = arith.mulf %540, %541 : vector<1x128xf32>
    %543 = arith.addf %539, %542 : vector<1x128xf32>
    %544 = vector.extract_strided_slice %32 {offsets = [14, 0], sizes = [1, 128], strides = [1, 1]} : vector<16x128xf32> to vector<1x128xf32>
    %545 = vector.extract_strided_slice %491 {offsets = [2, 0], sizes = [1, 128], strides = [1, 1]} : vector<4x128xf32> to vector<1x128xf32>
    %546 = arith.mulf %544, %545 : vector<1x128xf32>
    %547 = arith.addf %543, %546 : vector<1x128xf32>
    %548 = vector.extract_strided_slice %32 {offsets = [15, 0], sizes = [1, 128], strides = [1, 1]} : vector<16x128xf32> to vector<1x128xf32>
    %549 = vector.extract_strided_slice %491 {offsets = [3, 0], sizes = [1, 128], strides = [1, 1]} : vector<4x128xf32> to vector<1x128xf32>
    %550 = arith.mulf %548, %549 : vector<1x128xf32>
    %551 = arith.addf %547, %550 : vector<1x128xf32>
    %552 = tpu.concatenate %506, %521, %536, %551 in 0 : vector<1x128xf32>, vector<1x128xf32>, vector<1x128xf32>, vector<1x128xf32> -> vector<4x128xf32>
    %553 = vector.broadcast %158 : vector<1x128xf32> to vector<4x128xf32>
    %554 = arith.mulf %553, %427 : vector<4x128xf32>
    %555 = arith.addf %552, %554 : vector<4x128xf32>
    %556 = vector.extract_strided_slice %32 {offsets = [0, 0], sizes = [1, 128], strides = [1, 1]} : vector<16x128xf32> to vector<1x128xf32>
    %557 = vector.extract_strided_slice %555 {offsets = [0, 0], sizes = [1, 128], strides = [1, 1]} : vector<4x128xf32> to vector<1x128xf32>
    %558 = arith.mulf %556, %557 : vector<1x128xf32>
    %559 = vector.extract_strided_slice %32 {offsets = [1, 0], sizes = [1, 128], strides = [1, 1]} : vector<16x128xf32> to vector<1x128xf32>
    %560 = vector.extract_strided_slice %555 {offsets = [1, 0], sizes = [1, 128], strides = [1, 1]} : vector<4x128xf32> to vector<1x128xf32>
    %561 = arith.mulf %559, %560 : vector<1x128xf32>
    %562 = arith.addf %558, %561 : vector<1x128xf32>
    %563 = vector.extract_strided_slice %32 {offsets = [2, 0], sizes = [1, 128], strides = [1, 1]} : vector<16x128xf32> to vector<1x128xf32>
    %564 = vector.extract_strided_slice %555 {offsets = [2, 0], sizes = [1, 128], strides = [1, 1]} : vector<4x128xf32> to vector<1x128xf32>
    %565 = arith.mulf %563, %564 : vector<1x128xf32>
    %566 = arith.addf %562, %565 : vector<1x128xf32>
    %567 = vector.extract_strided_slice %32 {offsets = [3, 0], sizes = [1, 128], strides = [1, 1]} : vector<16x128xf32> to vector<1x128xf32>
    %568 = vector.extract_strided_slice %555 {offsets = [3, 0], sizes = [1, 128], strides = [1, 1]} : vector<4x128xf32> to vector<1x128xf32>
    %569 = arith.mulf %567, %568 : vector<1x128xf32>
    %570 = arith.addf %566, %569 : vector<1x128xf32>
    %571 = vector.extract_strided_slice %32 {offsets = [4, 0], sizes = [1, 128], strides = [1, 1]} : vector<16x128xf32> to vector<1x128xf32>
    %572 = vector.extract_strided_slice %555 {offsets = [0, 0], sizes = [1, 128], strides = [1, 1]} : vector<4x128xf32> to vector<1x128xf32>
    %573 = arith.mulf %571, %572 : vector<1x128xf32>
    %574 = vector.extract_strided_slice %32 {offsets = [5, 0], sizes = [1, 128], strides = [1, 1]} : vector<16x128xf32> to vector<1x128xf32>
    %575 = vector.extract_strided_slice %555 {offsets = [1, 0], sizes = [1, 128], strides = [1, 1]} : vector<4x128xf32> to vector<1x128xf32>
    %576 = arith.mulf %574, %575 : vector<1x128xf32>
    %577 = arith.addf %573, %576 : vector<1x128xf32>
    %578 = vector.extract_strided_slice %32 {offsets = [6, 0], sizes = [1, 128], strides = [1, 1]} : vector<16x128xf32> to vector<1x128xf32>
    %579 = vector.extract_strided_slice %555 {offsets = [2, 0], sizes = [1, 128], strides = [1, 1]} : vector<4x128xf32> to vector<1x128xf32>
    %580 = arith.mulf %578, %579 : vector<1x128xf32>
    %581 = arith.addf %577, %580 : vector<1x128xf32>
    %582 = vector.extract_strided_slice %32 {offsets = [7, 0], sizes = [1, 128], strides = [1, 1]} : vector<16x128xf32> to vector<1x128xf32>
    %583 = vector.extract_strided_slice %555 {offsets = [3, 0], sizes = [1, 128], strides = [1, 1]} : vector<4x128xf32> to vector<1x128xf32>
    %584 = arith.mulf %582, %583 : vector<1x128xf32>
    %585 = arith.addf %581, %584 : vector<1x128xf32>
    %586 = vector.extract_strided_slice %32 {offsets = [8, 0], sizes = [1, 128], strides = [1, 1]} : vector<16x128xf32> to vector<1x128xf32>
    %587 = vector.extract_strided_slice %555 {offsets = [0, 0], sizes = [1, 128], strides = [1, 1]} : vector<4x128xf32> to vector<1x128xf32>
    %588 = arith.mulf %586, %587 : vector<1x128xf32>
    %589 = vector.extract_strided_slice %32 {offsets = [9, 0], sizes = [1, 128], strides = [1, 1]} : vector<16x128xf32> to vector<1x128xf32>
    %590 = vector.extract_strided_slice %555 {offsets = [1, 0], sizes = [1, 128], strides = [1, 1]} : vector<4x128xf32> to vector<1x128xf32>
    %591 = arith.mulf %589, %590 : vector<1x128xf32>
    %592 = arith.addf %588, %591 : vector<1x128xf32>
    %593 = vector.extract_strided_slice %32 {offsets = [10, 0], sizes = [1, 128], strides = [1, 1]} : vector<16x128xf32> to vector<1x128xf32>
    %594 = vector.extract_strided_slice %555 {offsets = [2, 0], sizes = [1, 128], strides = [1, 1]} : vector<4x128xf32> to vector<1x128xf32>
    %595 = arith.mulf %593, %594 : vector<1x128xf32>
    %596 = arith.addf %592, %595 : vector<1x128xf32>
    %597 = vector.extract_strided_slice %32 {offsets = [11, 0], sizes = [1, 128], strides = [1, 1]} : vector<16x128xf32> to vector<1x128xf32>
    %598 = vector.extract_strided_slice %555 {offsets = [3, 0], sizes = [1, 128], strides = [1, 1]} : vector<4x128xf32> to vector<1x128xf32>
    %599 = arith.mulf %597, %598 : vector<1x128xf32>
    %600 = arith.addf %596, %599 : vector<1x128xf32>
    %601 = vector.extract_strided_slice %32 {offsets = [12, 0], sizes = [1, 128], strides = [1, 1]} : vector<16x128xf32> to vector<1x128xf32>
    %602 = vector.extract_strided_slice %555 {offsets = [0, 0], sizes = [1, 128], strides = [1, 1]} : vector<4x128xf32> to vector<1x128xf32>
    %603 = arith.mulf %601, %602 : vector<1x128xf32>
    %604 = vector.extract_strided_slice %32 {offsets = [13, 0], sizes = [1, 128], strides = [1, 1]} : vector<16x128xf32> to vector<1x128xf32>
    %605 = vector.extract_strided_slice %555 {offsets = [1, 0], sizes = [1, 128], strides = [1, 1]} : vector<4x128xf32> to vector<1x128xf32>
    %606 = arith.mulf %604, %605 : vector<1x128xf32>
    %607 = arith.addf %603, %606 : vector<1x128xf32>
    %608 = vector.extract_strided_slice %32 {offsets = [14, 0], sizes = [1, 128], strides = [1, 1]} : vector<16x128xf32> to vector<1x128xf32>
    %609 = vector.extract_strided_slice %555 {offsets = [2, 0], sizes = [1, 128], strides = [1, 1]} : vector<4x128xf32> to vector<1x128xf32>
    %610 = arith.mulf %608, %609 : vector<1x128xf32>
    %611 = arith.addf %607, %610 : vector<1x128xf32>
    %612 = vector.extract_strided_slice %32 {offsets = [15, 0], sizes = [1, 128], strides = [1, 1]} : vector<16x128xf32> to vector<1x128xf32>
    %613 = vector.extract_strided_slice %555 {offsets = [3, 0], sizes = [1, 128], strides = [1, 1]} : vector<4x128xf32> to vector<1x128xf32>
    %614 = arith.mulf %612, %613 : vector<1x128xf32>
    %615 = arith.addf %611, %614 : vector<1x128xf32>
    %616 = tpu.concatenate %570, %585, %600, %615 in 0 : vector<1x128xf32>, vector<1x128xf32>, vector<1x128xf32>, vector<1x128xf32> -> vector<4x128xf32>
    %617 = vector.broadcast %156 : vector<1x128xf32> to vector<4x128xf32>
    %618 = arith.mulf %617, %427 : vector<4x128xf32>
    %619 = arith.addf %616, %618 : vector<4x128xf32>
    %620 = vector.broadcast %171 : vector<1x128xf32> to vector<4x128xf32>
    %621 = arith.mulf %619, %620 : vector<4x128xf32>
    %622 = arith.addf %365, %621 : vector<4x128xf32>
    %623 = tpu.concatenate %1, %622 in 0 : vector<4x128xf32>, vector<4x128xf32> -> vector<8x128xf32>
    %c0_31 = arith.constant 0 : index
    %c0_32 = arith.constant 0 : index
    %624 = vector.load %arg6[%c0_31, %c0_32] : memref<8x128xf32, #tpu.memory_space<vmem>>, vector<8x128xf32>
    tpu.vector_store %arg6[%c0_31, %c0_32], %623 {strides = array<i32>} : memref<8x128xf32, #tpu.memory_space<vmem>>, vector<8x128xf32>,
    return
  }
  func.func @transform_0(%arg0: i32) -> (i32, i32) {
    %c0_i32 = arith.constant 0 : i32
    %c0_i32_0 = arith.constant 0 : i32
    return %c0_i32, %arg0 : i32, i32
  }
  func.func @transform_1(%arg0: i32) -> (i32, i32) {
    %c0_i32 = arith.constant 0 : i32
    %c0_i32_0 = arith.constant 0 : i32
    %c0_i32_1 = arith.constant 0 : i32
    return %c0_i32, %c0_i32_0 : i32, i32
  }
  func.func @transform_2(%arg0: i32) -> (i32, i32) {
    %c0_i32 = arith.constant 0 : i32
    %c0_i32_0 = arith.constant 0 : i32
    %c0_i32_1 = arith.constant 0 : i32
    return %c0_i32, %c0_i32_0 : i32, i32
  }
  func.func @transform_3(%arg0: i32) -> (i32, i32) {
    %c0_i32 = arith.constant 0 : i32
    %c0_i32_0 = arith.constant 0 : i32
    %c0_i32_1 = arith.constant 0 : i32
    return %c0_i32, %c0_i32_0 : i32, i32
  }
  func.func @transform_4(%arg0: i32) -> (i32, i32) {
    %c0_i32 = arith.constant 0 : i32
    %c0_i32_0 = arith.constant 0 : i32
    %c0_i32_1 = arith.constant 0 : i32
    return %c0_i32, %c0_i32_0 : i32, i32
  }
  func.func @transform_5(%arg0: i32) -> (i32, i32) {
    %c0_i32 = arith.constant 0 : i32
    %c0_i32_0 = arith.constant 0 : i32
    return %c0_i32, %arg0 : i32, i32
  }
}

</mosaic_0001>

<llo_original>
// kernel: tpu_custom_call.1
$region0: #{tpu_custom_call.1}
  #allocation0 [shape = 'u32[]', space=smem, size = 0x4, offset = 0x4, fixed_abs, tag = 'smem constant byte address 0x4 - core index']
  #allocation1 [shape = 'u32[144,128]{1,0:T(1,128)}', space=vmem, size = 0x12000, scoped, tag = 'internal scratch']
  %s0 = inlined_call_operand.vmem [shape: f32[8,128], index: 0, kind: input, shape index: {}]
  %s1 = inlined_call_operand.vmem [shape: f32[64,8], index: 1, kind: input, shape index: {}]
  %s2 = inlined_call_operand.vmem [shape: f32[32,1], index: 2, kind: input, shape index: {}]
  %s3 = inlined_call_operand.vmem [shape: f32[32,1], index: 3, kind: input, shape index: {}]
  %s4 = inlined_call_operand.vmem [shape: f32[20,96], index: 4, kind: input, shape index: {}]
  %s5 = inlined_call_operand.hbm [shape: f32[8,128], index: 5, kind: output, shape index: {}]
  %s6 = sld [smem:[#allocation0]]
  $region30: #{tpu_custom_call.1} parent=0
    _
  %s8 = ssub.s32 1, %s6
  %s9 = scalar_select 0, %s8, %s6
  $region1: #{tpu_custom_call.1} parent=0
    #allocation2 [shape = 'u8[4096]{0}', space=vmem, size = 0x1000, scoped, tag = 'output window, operand 0, single buffered']
    #allocation3 [shape = 's32[1]{0}', space=sflag, size = 0x4, scoped, tag = 'scoped memory for tpu_custom_call.1']
    %10 = vsyncpa [#allocation3], 0
    // Predicated region
    $region2: #{tpu_custom_call.1} parent=1 // pred_check
      _
    $region3: #{tpu_custom_call.1} parent=1 // pred_check_branch
      %12 = sbr.rel (0) target = $region5
    $region4: #{tpu_custom_call.1} parent=1 // pred_region
      _
    $region5: #{tpu_custom_call.1} parent=1 // pred_fallthru
      _
    // Predicated region
    $region6: #{tpu_custom_call.1} parent=1 // pred_check
      _
    $region7: #{tpu_custom_call.1} parent=1 // pred_check_branch
      %14 = sbr.rel (0) target = $region9
    $region8: #{tpu_custom_call.1} parent=1 // pred_region
      _
    $region9: #{tpu_custom_call.1} parent=1 // pred_fallthru
      _
    // Predicated region
    $region10: #{tpu_custom_call.1} parent=1 // pred_check
      _
    $region11: #{tpu_custom_call.1} parent=1 // pred_check_branch
      %16 = sbr.rel (0) target = $region13
    $region12: #{tpu_custom_call.1} parent=1 // pred_region
      _
    $region13: #{tpu_custom_call.1} parent=1 // pred_fallthru
      _
    // Predicated region
    $region14: #{tpu_custom_call.1} parent=1 // pred_check
      _
    $region15: #{tpu_custom_call.1} parent=1 // pred_check_branch
      %18 = sbr.rel (0) target = $region17
    $region16: #{tpu_custom_call.1} parent=1 // pred_region
      _
    $region17: #{tpu_custom_call.1} parent=1 // pred_fallthru
      _
    // Predicated region
    $region18: #{tpu_custom_call.1} parent=1 // pred_check
      _
    $region19: #{tpu_custom_call.1} parent=1 // pred_check_branch
      %20 = sbr.rel (0) target = $region21
    $region20: #{tpu_custom_call.1} parent=1 // pred_region
      _
    $region21: #{tpu_custom_call.1} parent=1 // pred_fallthru
      _
    %v21 = vld [vmem:[%s0] sm:$0xff]
    %v22 = vld [vmem:[%s1] sm:$0xff]
    %v23 = vld [vmem:[%s1 + $0x8] sm:$0xff]
    %v24 = vld [vmem:[%s1 + $0x10] sm:$0xff]
    %v25 = vld [vmem:[%s1 + $0x18] sm:$0xff]
    %v26 = vld [vmem:[%s1 + $0x20] sm:$0xff]
    %v27 = vld [vmem:[%s1 + $0x28] sm:$0xff]
    %v28 = vld [vmem:[%s1 + $0x30] sm:$0xff]
    %v29 = vld [vmem:[%s1 + $0x38] sm:$0xff]
    %vm30 = vcmask 64512
    %v32 = vsel %vm30, %v22, 0
    %v35 = vsel %vm30, %v23, 0
    %v38 = vsel %vm30, %v24, 0
    %v41 = vsel %vm30, %v25, 0
    %v44 = vsel %vm30, %v26, 0
    %v47 = vsel %vm30, %v27, 0
    %v50 = vsel %vm30, %v28, 0
    %v53 = vsel %vm30, %v29, 0
    %55 = vmatprep.subr.mxu0 0.0
    %56 = vmatpush1.msra.mxu0 0.0
    %57 = vmatprep.subr.mxu0 0.0
    %58 = vmatpush1.msra.mxu0 0.0
    %59 = vmatprep.subr.mxu0 0.0
    %60 = vmatpush1.msra.mxu0 0.0
    %61 = vmatprep.subr.mxu0 0.0
    %62 = vmatpush1.msra.mxu0 0.0
    %63 = vmatprep.subr.mxu0 0.0
    %64 = vmatpush1.msra.mxu0 0.0
    %65 = vmatprep.subr.mxu0 0.0
    %66 = vmatpush1.msra.mxu0 0.0
    %67 = vmatprep.subr.mxu0 0.0
    %68 = vmatpush1.msra.mxu0 0.0
    %69 = vmatprep.subr.mxu0 0.0
    %70 = vmatpush1.msra.mxu0 0.0
    %71 = vmatprep.subr.mxu0 0.0
    %72 = vmatpush1.msra.mxu0 0.0
    %73 = vmatprep.subr.mxu0 0.0
    %74 = vmatpush1.msra.mxu0 0.0
    %75 = vmatprep.subr.mxu0 0.0
    %76 = vmatpush1.msra.mxu0 0.0
    %77 = vmatprep.subr.mxu0 0.0
    %78 = vmatpush1.msra.mxu0 0.0
    %79 = vmatprep.subr.mxu0 0.0
    %80 = vmatpush1.msra.mxu0 0.0
    %81 = vmatprep.subr.mxu0 0.0
    %82 = vmatpush1.msra.mxu0 0.0
    %83 = vmatprep.subr.mxu0 0.0
    %84 = vmatpush1.msra.mxu0 0.0
    %85 = vmatprep.subr.mxu0 0.0
    %86 = vmatpush1.msra.mxu0 %v21
    %87 = vmatprep.subr.mxu0 0.0
    %88 = vmatpush2.msra.mxu0 0.0
    %89 = vmatprep.subr.mxu0 0.0
    %90 = vmatpush2.msra.mxu0 0.0
    %91 = vmatprep.subr.mxu0 0.0
    %92 = vmatpush2.msra.mxu0 0.0
    %93 = vmatprep.subr.mxu0 0.0
    %94 = vmatpush2.msra.mxu0 0.0
    %95 = vmatprep.subr.mxu0 0.0
    %96 = vmatpush2.msra.mxu0 0.0
    %97 = vmatprep.subr.mxu0 0.0
    %98 = vmatpush2.msra.mxu0 0.0
    %99 = vmatprep.subr.mxu0 0.0
    %100 = vmatpush2.msra.mxu0 0.0
    %101 = vmatprep.subr.mxu0 0.0
    %102 = vmatpush2.msra.mxu0 0.0
    %103 = vmatprep.subr.mxu0 0.0
    %104 = vmatpush2.msra.mxu0 0.0
    %105 = vmatprep.subr.mxu0 0.0
    %106 = vmatpush2.msra.mxu0 0.0
    %107 = vmatprep.subr.mxu0 0.0
    %108 = vmatpush2.msra.mxu0 0.0
    %109 = vmatprep.subr.mxu0 0.0
    %110 = vmatpush2.msra.mxu0 0.0
    %111 = vmatprep.subr.mxu0 0.0
    %112 = vmatpush2.msra.mxu0 0.0
    %113 = vmatprep.subr.mxu0 0.0
    %114 = vmatpush2.msra.mxu0 0.0
    %115 = vmatprep.subr.mxu0 0.0
    %116 = vmatpush2.msra.mxu0 0.0
    %117 = vmatprep.subr.mxu0 0.0
    %118 = vmatpush2.msra.mxu0 0.0
    %119 = vmatprep.mubr.f32.mxu0 0.0
    %120 = vmatmul.mubr.f32.gmra.mxu0 %v32
    %v121 = vpop.f32.mrf.mxu0
    %v122 = vadd.f32 0.0, %v121
    %v123 = vpop.f32.mrf.mxu0
    %124 = vmatprep.mubr.f32.mxu0 0.0
    %125 = vmatmul.mubr.f32.gmra.mxu0 %v35
    %v126 = vpop.f32.mrf.mxu0
    %v127 = vadd.f32 0.0, %v126
    %v128 = vpop.f32.mrf.mxu0
    %129 = vmatprep.mubr.f32.mxu0 0.0
    %130 = vmatmul.mubr.f32.gmra.mxu0 %v38
    %v131 = vpop.f32.mrf.mxu0
    %v132 = vadd.f32 0.0, %v131
    %v133 = vpop.f32.mrf.mxu0
    %134 = vmatprep.mubr.f32.mxu0 0.0
    %135 = vmatmul.mubr.f32.gmra.mxu0 %v41
    %v136 = vpop.f32.mrf.mxu0
    %v137 = vadd.f32 0.0, %v136
    %v138 = vpop.f32.mrf.mxu0
    %139 = vmatprep.mubr.f32.mxu0 0.0
    %140 = vmatmul.mubr.f32.gmra.mxu0 %v44
    %v141 = vpop.f32.mrf.mxu0
    %v142 = vadd.f32 0.0, %v141
    %v143 = vpop.f32.mrf.mxu0
    %144 = vmatprep.mubr.f32.mxu0 0.0
    %145 = vmatmul.mubr.f32.gmra.mxu0 %v47
    %v146 = vpop.f32.mrf.mxu0
    %v147 = vadd.f32 0.0, %v146
    %v148 = vpop.f32.mrf.mxu0
    %149 = vmatprep.mubr.f32.mxu0 0.0
    %150 = vmatmul.mubr.f32.gmra.mxu0 %v50
    %v151 = vpop.f32.mrf.mxu0
    %v152 = vadd.f32 0.0, %v151
    %v153 = vpop.f32.mrf.mxu0
    %154 = vmatprep.mubr.f32.mxu0 0.0
    %155 = vmatmul.mubr.f32.gmra.mxu0 %v53
    %v156 = vpop.f32.mrf.mxu0
    %v157 = vadd.f32 0.0, %v156
    %v158 = vpop.f32.mrf.mxu0
    %159 = vdwg.mxu0
    %v160 = vld [vmem:[%s2] sm:$0xff]
    %v161 = vld [vmem:[%s2 + $0x8] sm:$0xff]
    %v162 = vld [vmem:[%s2 + $0x10] sm:$0xff]
    %v163 = vld [vmem:[%s2 + $0x18] sm:$0xff]
    %165 = vset.pattern.permute.xlu0 0
    %166 = vperm.xlu0 %165, %v160
    %v167 = vpop.permute.xlu0 %166
    %170 = vset.pattern.permute.xlu0 0
    %171 = vperm.xlu0 %170, %v161
    %v172 = vpop.permute.xlu0 %171
    %175 = vset.pattern.permute.xlu0 0
    %176 = vperm.xlu0 %175, %v162
    %v177 = vpop.permute.xlu0 %176
    %180 = vset.pattern.permute.xlu0 0
    %181 = vperm.xlu0 %180, %v163
    %v182 = vpop.permute.xlu0 %181
    %v184 = vadd.f32 %v122, %v167
    %v185 = vadd.f32 %v127, %v172
    %v186 = vadd.f32 %v132, %v177
    %v187 = vadd.f32 %v137, %v182
    %v188 = vtanh.pop %v184
    %v189 = vtanh.pop %v185
    %v190 = vtanh.pop %v186
    %v191 = vtanh.pop %v187
    %v192 = vld [vmem:[%s3] sm:$0xff]
    %v193 = vld [vmem:[%s3 + $0x8] sm:$0xff]
    %v194 = vld [vmem:[%s3 + $0x10] sm:$0xff]
    %v195 = vld [vmem:[%s3 + $0x18] sm:$0xff]
    %v196 = vmul.f32 %v188, %v188
    %v197 = vmul.f32 %v189, %v189
    %v198 = vmul.f32 %v190, %v190
    %v199 = vmul.f32 %v191, %v191
    %v200 = vsub.f32 1.0, %v196
    %v201 = vsub.f32 1.0, %v197
    %v202 = vsub.f32 1.0, %v198
    %v203 = vsub.f32 1.0, %v199
    %205 = vset.pattern.permute.xlu0 0
    %206 = vperm.xlu0 %205, %v192
    %v207 = vpop.permute.xlu0 %206
    %210 = vset.pattern.permute.xlu0 0
    %211 = vperm.xlu0 %210, %v193
    %v212 = vpop.permute.xlu0 %211
    %215 = vset.pattern.permute.xlu0 0
    %216 = vperm.xlu0 %215, %v194
    %v217 = vpop.permute.xlu0 %216
    %220 = vset.pattern.permute.xlu0 0
    %221 = vperm.xlu0 %220, %v195
    %v222 = vpop.permute.xlu0 %221
    %v224 = vmul.f32 %v207, %v200
    %v225 = vmul.f32 %v212, %v201
    %v226 = vmul.f32 %v217, %v202
    %v227 = vmul.f32 %v222, %v203
    %v228 = vmul.f32 %v188, -2.0
    %v229 = vmul.f32 %v189, -2.0
    %v230 = vmul.f32 %v190, -2.0
    %v231 = vmul.f32 %v191, -2.0
    %v232 = vmul.f32 %v228, %v224
    %v233 = vmul.f32 %v229, %v225
    %v234 = vmul.f32 %v230, %v226
    %v235 = vmul.f32 %v231, %v227
    %v236 = vmul.f32 %v232, %v142
    %v237 = vmul.f32 %v233, %v147
    %v238 = vmul.f32 %v234, %v152
    %v239 = vmul.f32 %v235, %v157
    %v240 = vld [vmem:[%s4] sm:$0xff]
    %v241 = vld [vmem:[%s4 + $0x8] sm:$0xff]
    %v242 = vld [vmem:[%s4 + $0x10] sm:$0xf]
    %vm243 = vcmask 785408
    %v245 = vsel %vm243, %v240, 0
    %v248 = vsel %vm243, %v241, 0
    %v251 = vsel %vm243, %v242, 0
    %253 = vmatprep.subr.mxu0 0.0
    %254 = vmatpush1.msra.mxu0 0.0
    %255 = vmatprep.subr.mxu0 0.0
    %256 = vmatpush1.msra.mxu0 0.0
    %257 = vmatprep.subr.mxu0 0.0
    %258 = vmatpush1.msra.mxu0 0.0
    %259 = vmatprep.subr.mxu0 0.0
    %260 = vmatpush1.msra.mxu0 0.0
    %261 = vmatprep.subr.mxu0 0.0
    %262 = vmatpush1.msra.mxu0 %v239
    %263 = vmatprep.subr.mxu0 0.0
    %264 = vmatpush1.msra.mxu0 %v238
    %265 = vmatprep.subr.mxu0 0.0
    %266 = vmatpush1.msra.mxu0 %v237
    %267 = vmatprep.subr.mxu0 0.0
    %268 = vmatpush1.msra.mxu0 %v236
    %269 = vmatprep.subr.mxu0 0.0
    %270 = vmatpush1.msra.mxu0 %v227
    %271 = vmatprep.subr.mxu0 0.0
    %272 = vmatpush1.msra.mxu0 %v226
    %273 = vmatprep.subr.mxu0 0.0
    %274 = vmatpush1.msra.mxu0 %v225
    %275 = vmatprep.subr.mxu0 0.0
    %276 = vmatpush1.msra.mxu0 %v224
    %277 = vmatprep.subr.mxu0 0.0
    %278 = vmatpush1.msra.mxu0 %v235
    %279 = vmatprep.subr.mxu0 0.0
    %280 = vmatpush1.msra.mxu0 %v234
    %281 = vmatprep.subr.mxu0 0.0
    %282 = vmatpush1.msra.mxu0 %v233
    %283 = vmatprep.subr.mxu0 0.0
    %284 = vmatpush1.msra.mxu0 %v232
    %285 = vmatprep.subr.mxu0 0.0
    %286 = vmatpush2.msra.mxu0 0.0
    %287 = vmatprep.subr.mxu0 0.0
    %288 = vmatpush2.msra.mxu0 0.0
    %289 = vmatprep.subr.mxu0 0.0
    %290 = vmatpush2.msra.mxu0 0.0
    %291 = vmatprep.subr.mxu0 0.0
    %292 = vmatpush2.msra.mxu0 0.0
    %293 = vmatprep.subr.mxu0 0.0
    %294 = vmatpush2.msra.mxu0 0.0
    %295 = vmatprep.subr.mxu0 0.0
    %296 = vmatpush2.msra.mxu0 0.0
    %297 = vmatprep.subr.mxu0 0.0
    %298 = vmatpush2.msra.mxu0 0.0
    %299 = vmatprep.subr.mxu0 0.0
    %300 = vmatpush2.msra.mxu0 0.0
    %301 = vmatprep.subr.mxu0 0.0
    %302 = vmatpush2.msra.mxu0 0.0
    %303 = vmatprep.subr.mxu0 0.0
    %304 = vmatpush2.msra.mxu0 0.0
    %305 = vmatprep.subr.mxu0 0.0
    %306 = vmatpush2.msra.mxu0 0.0
    %307 = vmatprep.subr.mxu0 0.0
    %308 = vmatpush2.msra.mxu0 0.0
    %309 = vmatprep.subr.mxu0 0.0
    %310 = vmatpush2.msra.mxu0 0.0
    %311 = vmatprep.subr.mxu0 0.0
    %312 = vmatpush2.msra.mxu0 0.0
    %313 = vmatprep.subr.mxu0 0.0
    %314 = vmatpush2.msra.mxu0 0.0
    %315 = vmatprep.subr.mxu0 0.0
    %316 = vmatpush2.msra.mxu0 0.0
    %317 = vmatprep.mubr.f32.mxu0 0.0
    %318 = vmatmul.mubr.f32.gmra.mxu0 %v245
    %v319 = vpop.f32.mrf.mxu0
    %v320 = vadd.f32 0.0, %v319
    %v321 = vpop.f32.mrf.mxu0
    %322 = vmatprep.mubr.f32.mxu0 0.0
    %323 = vmatmul.mubr.f32.gmra.mxu0 %v248
    %v324 = vpop.f32.mrf.mxu0
    %v325 = vadd.f32 0.0, %v324
    %v326 = vpop.f32.mrf.mxu0
    %327 = vmatprep.mubr.f32.mxu0 0.0
    %328 = vmatmul.mubr.f32.gmra.mxu0 %v251
    %v329 = vpop.f32.mrf.mxu0
    %v330 = vadd.f32 0.0, %v329
    %v331 = vpop.f32.mrf.mxu0
    %332 = vdwg.mxu0
    %v333 = vand.u32 2147483647, %v320
    %v334 = vand.u32 2147483647, %v325
    %v335 = vmax.f32 %v333, %v334
    %v336 = vrot.slane %v335, 4
    %v337 = vmax.f32 %v335, %v336
    %v338 = vrot.slane %v337, 2
    %v339 = vmax.f32 %v337, %v338
    %v340 = vrot.slane %v339, 1
    %v341 = vmax.f32 %v339, %v340
    %v342 = vmax.f32 %v341, 1e-30
    %v343 = vrcp.pop %v342
    %v344 = vmul.f32 %v320, %v343
    %v345 = vmul.f32 %v325, %v343
    %v346 = vmul.f32 %v330, %v343
    %v347 = vlaneseq
    %v348 = vshrl.u32 %v347, 7
    %v349 = vsub.s32 0, %v348
    %v350 = vrot.slane %v344, %v349
    %v351 = vmul.f32 %v350, %v344
    %v352 = vlaneseq
    %v353 = vshrl.u32 %v352, 7
    %v354 = vsub.s32 1, %v353
    %v355 = vrot.slane %v344, %v354
    %v356 = vmul.f32 %v355, %v344
    %v358 = vrot.slane %v356, 4
    %v360 = vadd.f32 %v351, %v358
    %v361 = vlaneseq
    %v362 = vshrl.u32 %v361, 7
    %v363 = vsub.s32 2, %v362
    %v364 = vrot.slane %v344, %v363
    %v365 = vmul.f32 %v364, %v345
    %v366 = vadd.f32 %v360, %v365
    %v367 = vlaneseq
    %v368 = vshrl.u32 %v367, 7
    %v369 = vsub.s32 3, %v368
    %v370 = vrot.slane %v344, %v369
    %v371 = vmul.f32 %v370, %v345
    %v373 = vrot.slane %v371, 4
    %v375 = vadd.f32 %v366, %v373
    %v376 = vlaneseq
    %v377 = vshrl.u32 %v376, 7
    %v378 = vsub.s32 4, %v377
    %v379 = vrot.slane %v344, %v378
    %v380 = vmul.f32 %v379, %v344
    %v381 = vlaneseq
    %v382 = vshrl.u32 %v381, 7
    %v383 = vsub.s32 5, %v382
    %v384 = vrot.slane %v344, %v383
    %v385 = vmul.f32 %v384, %v344
    %v387 = vrot.slane %v385, 4
    %v389 = vadd.f32 %v380, %v387
    %v390 = vlaneseq
    %v391 = vshrl.u32 %v390, 7
    %v392 = vsub.s32 6, %v391
    %v393 = vrot.slane %v344, %v392
    %v394 = vmul.f32 %v393, %v345
    %v395 = vadd.f32 %v389, %v394
    %v396 = vlaneseq
    %v397 = vshrl.u32 %v396, 7
    %v398 = vsub.s32 7, %v397
    %v399 = vrot.slane %v344, %v398
    %v400 = vmul.f32 %v399, %v345
    %v402 = vrot.slane %v400, 4
    %v404 = vadd.f32 %v395, %v402
    %v405 = vlaneseq
    %v406 = vshrl.u32 %v405, 7
    %v407 = vsub.s32 0, %v406
    %v408 = vrot.slane %v345, %v407
    %v409 = vmul.f32 %v408, %v344
    %v410 = vlaneseq
    %v411 = vshrl.u32 %v410, 7
    %v412 = vsub.s32 1, %v411
    %v413 = vrot.slane %v345, %v412
    %v414 = vmul.f32 %v413, %v344
    %v416 = vrot.slane %v414, 4
    %v418 = vadd.f32 %v409, %v416
    %v419 = vlaneseq
    %v420 = vshrl.u32 %v419, 7
    %v421 = vsub.s32 2, %v420
    %v422 = vrot.slane %v345, %v421
    %v423 = vmul.f32 %v422, %v345
    %v424 = vadd.f32 %v418, %v423
    %v425 = vlaneseq
    %v426 = vshrl.u32 %v425, 7
    %v427 = vsub.s32 3, %v426
    %v428 = vrot.slane %v345, %v427
    %v429 = vmul.f32 %v428, %v345
    %v431 = vrot.slane %v429, 4
    %v433 = vadd.f32 %v424, %v431
    %v434 = vlaneseq
    %v435 = vshrl.u32 %v434, 7
    %v436 = vsub.s32 4, %v435
    %v437 = vrot.slane %v345, %v436
    %v438 = vmul.f32 %v437, %v344
    %v439 = vlaneseq
    %v440 = vshrl.u32 %v439, 7
    %v441 = vsub.s32 5, %v440
    %v442 = vrot.slane %v345, %v441
    %v443 = vmul.f32 %v442, %v344
    %v445 = vrot.slane %v443, 4
    %v447 = vadd.f32 %v438, %v445
    %v448 = vlaneseq
    %v449 = vshrl.u32 %v448, 7
    %v450 = vsub.s32 6, %v449
    %v451 = vrot.slane %v345, %v450
    %v452 = vmul.f32 %v451, %v345
    %v453 = vadd.f32 %v447, %v452
    %v454 = vlaneseq
    %v455 = vshrl.u32 %v454, 7
    %v456 = vsub.s32 7, %v455
    %v457 = vrot.slane %v345, %v456
    %v458 = vmul.f32 %v457, %v345
    %v460 = vrot.slane %v458, 4
    %v462 = vadd.f32 %v453, %v460
    %v464 = vrot.slane %v404, 4
    %v467 = vrot.slane %v462, 4
    %vm469 = vcmask 1043456
    %v470 = vsel %vm469, %v375, %v464
    %v471 = vsel %vm469, %v433, %v467
    %v473 = vrot.slane %v344, 5
    %v475 = vadd.f32 %v344, %v473
    %v477 = vrot.slane %v345, 2
    %v479 = vadd.f32 %v475, %v477
    %v480 = vrot.slane %v345, 7
    %v482 = vadd.f32 %v479, %v480
    %v483 = vmul.f32 %v344, %v344
    %v484 = vmul.f32 %v345, %v345
    %v485 = vadd.f32 %v483, %v484
    %v486 = vrot.slane %v485, 4
    %v487 = vadd.f32 %v485, %v486
    %v488 = vrot.slane %v487, 2
    %v489 = vadd.f32 %v487, %v488
    %v490 = vrot.slane %v489, 1
    %v491 = vadd.f32 %v489, %v490
    %v492 = vmul.f32 %v344, %v470
    %v493 = vmul.f32 %v345, %v471
    %v494 = vadd.f32 %v492, %v493
    %v495 = vrot.slane %v494, 4
    %v496 = vadd.f32 %v494, %v495
    %v497 = vrot.slane %v496, 2
    %v498 = vadd.f32 %v496, %v497
    %v499 = vrot.slane %v498, 1
    %v500 = vadd.f32 %v498, %v499
    %v501 = vmul.f32 %v470, %v470
    %v502 = vmul.f32 %v471, %v471
    %v503 = vadd.f32 %v501, %v502
    %v504 = vrot.slane %v503, 4
    %v505 = vadd.f32 %v503, %v504
    %v506 = vrot.slane %v505, 2
    %v507 = vadd.f32 %v505, %v506
    %v508 = vrot.slane %v507, 1
    %v509 = vadd.f32 %v507, %v508
    %v510 = vmul.f32 %v482, %v482
    %v511 = vsub.f32 %v510, %v491
    %v512 = vmul.f32 %v511, 0.5
    %v513 = vmul.f32 %v512, %v482
    %v514 = vmul.f32 %v482, %v491
    %v515 = vsub.f32 %v513, %v514
    %v516 = vadd.f32 %v515, %v500
    %v517 = vmul.f32 %v516, 0.33333334
    %v518 = vmul.f32 %v517, %v482
    %v519 = vmul.f32 %v512, %v491
    %v520 = vsub.f32 %v518, %v519
    %v521 = vmul.f32 %v482, %v500
    %v522 = vadd.f32 %v520, %v521
    %v523 = vsub.f32 %v522, %v509
    %v524 = vmul.f32 %v523, 0.25
    %v525 = vmul.f32 %v517, -1.0
    %v526 = vmul.f32 %v482, -1.0
    %v527 = vand.u32 2147483647, %v524
    %vm528 = vcmp.gt.f32.partialorder %v527, 1e-30
    %vm529 = vcmp.ge.f32.partialorder %v524, 0.0
    %v530 = vsel %vm529, 1e-30, -1e-30
    %v531 = vsel %vm528, %v524, %v530
    %v532 = vrcp.pop %v531
    %v533 = vmul.f32 -1.0, %v532
    %v534 = vmul.f32 %v344, %v346
    %v536 = vrot.slane %v534, 1
    %v538 = vadd.f32 %v534, %v536
    %v539 = vrot.slane %v534, 2
    %v541 = vadd.f32 %v538, %v539
    %v542 = vrot.slane %v534, 3
    %v544 = vadd.f32 %v541, %v542
    %v546 = vrot.slane %v346, 4
    %v548 = vmul.f32 %v344, %v546
    %v550 = vrot.slane %v548, 1
    %v552 = vadd.f32 %v548, %v550
    %v553 = vrot.slane %v548, 2
    %v555 = vadd.f32 %v552, %v553
    %v556 = vrot.slane %v548, 3
    %v558 = vadd.f32 %v555, %v556
    %v559 = vmul.f32 %v345, %v346
    %v561 = vrot.slane %v559, 1
    %v563 = vadd.f32 %v559, %v561
    %v564 = vrot.slane %v559, 2
    %v566 = vadd.f32 %v563, %v564
    %v567 = vrot.slane %v559, 3
    %v569 = vadd.f32 %v566, %v567
    %v570 = vmul.f32 %v345, %v546
    %v572 = vrot.slane %v570, 1
    %v574 = vadd.f32 %v570, %v572
    %v575 = vrot.slane %v570, 2
    %v577 = vadd.f32 %v574, %v575
    %v578 = vrot.slane %v570, 3
    %v580 = vadd.f32 %v577, %v578
    %v582 = vrot.slane %v558, 3
    %v585 = vrot.slane %v569, 6
    %v588 = vrot.slane %v580, 1
    %vm590 = vcmask 1040384
    %v591 = vsel %vm590, %v544, %v582
    %vm592 = vcmask 1041408
    %v593 = vsel %vm592, %v591, %v585
    %vm594 = vcmask 1042432
    %v595 = vsel %vm594, %v593, %v588
    %v596 = vlaneseq
    %v597 = vshrl.u32 %v596, 7
    %v598 = vsub.s32 0, %v597
    %v599 = vrot.slane %v526, %v598
    %v600 = vmul.f32 %v599, %v346
    %v601 = vadd.f32 %v595, %v600
    %v602 = vmul.f32 %v344, %v601
    %v604 = vrot.slane %v602, 1
    %v606 = vadd.f32 %v602, %v604
    %v607 = vrot.slane %v602, 2
    %v609 = vadd.f32 %v606, %v607
    %v610 = vrot.slane %v602, 3
    %v612 = vadd.f32 %v609, %v610
    %v614 = vrot.slane %v601, 4
    %v616 = vmul.f32 %v344, %v614
    %v618 = vrot.slane %v616, 1
    %v620 = vadd.f32 %v616, %v618
    %v621 = vrot.slane %v616, 2
    %v623 = vadd.f32 %v620, %v621
    %v624 = vrot.slane %v616, 3
    %v626 = vadd.f32 %v623, %v624
    %v627 = vmul.f32 %v345, %v601
    %v629 = vrot.slane %v627, 1
    %v631 = vadd.f32 %v627, %v629
    %v632 = vrot.slane %v627, 2
    %v634 = vadd.f32 %v631, %v632
    %v635 = vrot.slane %v627, 3
    %v637 = vadd.f32 %v634, %v635
    %v638 = vmul.f32 %v345, %v614
    %v640 = vrot.slane %v638, 1
    %v642 = vadd.f32 %v638, %v640
    %v643 = vrot.slane %v638, 2
    %v645 = vadd.f32 %v642, %v643
    %v646 = vrot.slane %v638, 3
    %v648 = vadd.f32 %v645, %v646
    %v650 = vrot.slane %v626, 3
    %v653 = vrot.slane %v637, 6
    %v656 = vrot.slane %v648, 1
    %v658 = vsel %vm590, %v612, %v650
    %v659 = vsel %vm592, %v658, %v653
    %v660 = vsel %vm594, %v659, %v656
    %v661 = vlaneseq
    %v662 = vshrl.u32 %v661, 7
    %v663 = vsub.s32 0, %v662
    %v664 = vrot.slane %v512, %v663
    %v665 = vmul.f32 %v664, %v346
    %v666 = vadd.f32 %v660, %v665
    %v667 = vmul.f32 %v344, %v666
    %v669 = vrot.slane %v667, 1
    %v671 = vadd.f32 %v667, %v669
    %v672 = vrot.slane %v667, 2
    %v674 = vadd.f32 %v671, %v672
    %v675 = vrot.slane %v667, 3
    %v677 = vadd.f32 %v674, %v675
    %v679 = vrot.slane %v666, 4
    %v681 = vmul.f32 %v344, %v679
    %v683 = vrot.slane %v681, 1
    %v685 = vadd.f32 %v681, %v683
    %v686 = vrot.slane %v681, 2
    %v688 = vadd.f32 %v685, %v686
    %v689 = vrot.slane %v681, 3
    %v691 = vadd.f32 %v688, %v689
    %v692 = vmul.f32 %v345, %v666
    %v694 = vrot.slane %v692, 1
    %v696 = vadd.f32 %v692, %v694
    %v697 = vrot.slane %v692, 2
    %v699 = vadd.f32 %v696, %v697
    %v700 = vrot.slane %v692, 3
    %v702 = vadd.f32 %v699, %v700
    %v703 = vmul.f32 %v345, %v679
    %v705 = vrot.slane %v703, 1
    %v707 = vadd.f32 %v703, %v705
    %v708 = vrot.slane %v703, 2
    %v710 = vadd.f32 %v707, %v708
    %v711 = vrot.slane %v703, 3
    %v713 = vadd.f32 %v710, %v711
    %v715 = vrot.slane %v691, 3
    %v718 = vrot.slane %v702, 6
    %v721 = vrot.slane %v713, 1
    %v723 = vsel %vm590, %v677, %v715
    %v724 = vsel %vm592, %v723, %v718
    %v725 = vsel %vm594, %v724, %v721
    %v726 = vlaneseq
    %v727 = vshrl.u32 %v726, 7
    %v728 = vsub.s32 0, %v727
    %v729 = vrot.slane %v525, %v728
    %v730 = vmul.f32 %v729, %v346
    %v731 = vadd.f32 %v725, %v730
    %v732 = vlaneseq
    %v733 = vshrl.u32 %v732, 7
    %v734 = vsub.s32 0, %v733
    %v735 = vrot.slane %v533, %v734
    %v736 = vmul.f32 %v731, %v735
    %v737 = vmul.f32 %v344, %v736
    %v739 = vrot.slane %v737, 1
    %v741 = vadd.f32 %v737, %v739
    %v742 = vrot.slane %v737, 2
    %v744 = vadd.f32 %v741, %v742
    %v745 = vrot.slane %v737, 3
    %v747 = vadd.f32 %v744, %v745
    %v749 = vrot.slane %v736, 4
    %v751 = vmul.f32 %v344, %v749
    %v753 = vrot.slane %v751, 1
    %v755 = vadd.f32 %v751, %v753
    %v756 = vrot.slane %v751, 2
    %v758 = vadd.f32 %v755, %v756
    %v759 = vrot.slane %v751, 3
    %v761 = vadd.f32 %v758, %v759
    %v762 = vmul.f32 %v345, %v736
    %v764 = vrot.slane %v762, 1
    %v766 = vadd.f32 %v762, %v764
    %v767 = vrot.slane %v762, 2
    %v769 = vadd.f32 %v766, %v767
    %v770 = vrot.slane %v762, 3
    %v772 = vadd.f32 %v769, %v770
    %v773 = vmul.f32 %v345, %v749
    %v775 = vrot.slane %v773, 1
    %v777 = vadd.f32 %v773, %v775
    %v778 = vrot.slane %v773, 2
    %v780 = vadd.f32 %v777, %v778
    %v781 = vrot.slane %v773, 3
    %v783 = vadd.f32 %v780, %v781
    %v785 = vrot.slane %v761, 3
    %v788 = vrot.slane %v772, 6
    %v791 = vrot.slane %v783, 1
    %v793 = vsel %vm590, %v747, %v785
    %v794 = vsel %vm592, %v793, %v788
    %v795 = vsel %vm594, %v794, %v791
    %v796 = vsub.f32 %v346, %v795
    %v797 = vmul.f32 %v344, %v796
    %v799 = vrot.slane %v797, 1
    %v801 = vadd.f32 %v797, %v799
    %v802 = vrot.slane %v797, 2
    %v804 = vadd.f32 %v801, %v802
    %v805 = vrot.slane %v797, 3
    %v807 = vadd.f32 %v804, %v805
    %v809 = vrot.slane %v796, 4
    %v811 = vmul.f32 %v344, %v809
    %v813 = vrot.slane %v811, 1
    %v815 = vadd.f32 %v811, %v813
    %v816 = vrot.slane %v811, 2
    %v818 = vadd.f32 %v815, %v816
    %v819 = vrot.slane %v811, 3
    %v821 = vadd.f32 %v818, %v819
    %v822 = vmul.f32 %v345, %v796
    %v824 = vrot.slane %v822, 1
    %v826 = vadd.f32 %v822, %v824
    %v827 = vrot.slane %v822, 2
    %v829 = vadd.f32 %v826, %v827
    %v830 = vrot.slane %v822, 3
    %v832 = vadd.f32 %v829, %v830
    %v833 = vmul.f32 %v345, %v809
    %v835 = vrot.slane %v833, 1
    %v837 = vadd.f32 %v833, %v835
    %v838 = vrot.slane %v833, 2
    %v840 = vadd.f32 %v837, %v838
    %v841 = vrot.slane %v833, 3
    %v843 = vadd.f32 %v840, %v841
    %v845 = vrot.slane %v821, 3
    %v848 = vrot.slane %v832, 6
    %v851 = vrot.slane %v843, 1
    %v853 = vsel %vm590, %v807, %v845
    %v854 = vsel %vm592, %v853, %v848
    %v855 = vsel %vm594, %v854, %v851
    %v856 = vmul.f32 %v599, %v796
    %v857 = vadd.f32 %v855, %v856
    %v858 = vmul.f32 %v344, %v857
    %v860 = vrot.slane %v858, 1
    %v862 = vadd.f32 %v858, %v860
    %v863 = vrot.slane %v858, 2
    %v865 = vadd.f32 %v862, %v863
    %v866 = vrot.slane %v858, 3
    %v868 = vadd.f32 %v865, %v866
    %v870 = vrot.slane %v857, 4
    %v872 = vmul.f32 %v344, %v870
    %v874 = vrot.slane %v872, 1
    %v876 = vadd.f32 %v872, %v874
    %v877 = vrot.slane %v872, 2
    %v879 = vadd.f32 %v876, %v877
    %v880 = vrot.slane %v872, 3
    %v882 = vadd.f32 %v879, %v880
    %v883 = vmul.f32 %v345, %v857
    %v885 = vrot.slane %v883, 1
    %v887 = vadd.f32 %v883, %v885
    %v888 = vrot.slane %v883, 2
    %v890 = vadd.f32 %v887, %v888
    %v891 = vrot.slane %v883, 3
    %v893 = vadd.f32 %v890, %v891
    %v894 = vmul.f32 %v345, %v870
    %v896 = vrot.slane %v894, 1
    %v898 = vadd.f32 %v894, %v896
    %v899 = vrot.slane %v894, 2
    %v901 = vadd.f32 %v898, %v899
    %v902 = vrot.slane %v894, 3
    %v904 = vadd.f32 %v901, %v902
    %v906 = vrot.slane %v882, 3
    %v909 = vrot.slane %v893, 6
    %v912 = vrot.slane %v904, 1
    %v914 = vsel %vm590, %v868, %v906
    %v915 = vsel %vm592, %v914, %v909
    %v916 = vsel %vm594, %v915, %v912
    %v917 = vmul.f32 %v664, %v796
    %v918 = vadd.f32 %v916, %v917
    %v919 = vmul.f32 %v344, %v918
    %v921 = vrot.slane %v919, 1
    %v923 = vadd.f32 %v919, %v921
    %v924 = vrot.slane %v919, 2
    %v926 = vadd.f32 %v923, %v924
    %v927 = vrot.slane %v919, 3
    %v929 = vadd.f32 %v926, %v927
    %v931 = vrot.slane %v918, 4
    %v933 = vmul.f32 %v344, %v931
    %v935 = vrot.slane %v933, 1
    %v937 = vadd.f32 %v933, %v935
    %v938 = vrot.slane %v933, 2
    %v940 = vadd.f32 %v937, %v938
    %v941 = vrot.slane %v933, 3
    %v943 = vadd.f32 %v940, %v941
    %v944 = vmul.f32 %v345, %v918
    %v946 = vrot.slane %v944, 1
    %v948 = vadd.f32 %v944, %v946
    %v949 = vrot.slane %v944, 2
    %v951 = vadd.f32 %v948, %v949
    %v952 = vrot.slane %v944, 3
    %v954 = vadd.f32 %v951, %v952
    %v955 = vmul.f32 %v345, %v931
    %v957 = vrot.slane %v955, 1
    %v959 = vadd.f32 %v955, %v957
    %v960 = vrot.slane %v955, 2
    %v962 = vadd.f32 %v959, %v960
    %v963 = vrot.slane %v955, 3
    %v965 = vadd.f32 %v962, %v963
    %v967 = vrot.slane %v943, 3
    %v970 = vrot.slane %v954, 6
    %v973 = vrot.slane %v965, 1
    %v975 = vsel %vm590, %v929, %v967
    %v976 = vsel %vm592, %v975, %v970
    %v977 = vsel %vm594, %v976, %v973
    %v978 = vmul.f32 %v729, %v796
    %v979 = vadd.f32 %v977, %v978
    %v980 = vmul.f32 %v979, %v735
    %v981 = vadd.f32 %v736, %v980
    %v983 = vrot.slane %v21, 4
    %v986 = vrot.slane %v981, 4
    %v988 = vsel %vm469, %v983, %v986
    %989 = vst [vmem:[#allocation2] sm:$0xff] %v988
    // Predicated region
    $region22: #{tpu_custom_call.1} parent=1 // pred_check
      _
    $region23: #{tpu_custom_call.1} parent=1 // pred_check_branch
      %991 = sbr.rel (0) target = $region25
    $region24: #{tpu_custom_call.1} parent=1 // pred_region
      %s993 = ssub.s32 128, 128
      %994 = vsyncadd [#allocation3], %s993
      %s996 = sshll.u32 [#allocation2], 4
      %s997 = int_to_ptr.vmem [resolvable:$true] %s996
      %999 = dma.vmem_to_hbm [thread:$0]  %s997, 128, %s5, [#allocation3]
    $region25: #{tpu_custom_call.1} parent=1 // pred_fallthru
      _
    // Predicated region
    $region26: #{tpu_custom_call.1} parent=1 // pred_check
      _
    $region27: #{tpu_custom_call.1} parent=1 // pred_check_branch
      %1001 = sbr.rel (0) target = $region29
    $region28: #{tpu_custom_call.1} parent=1 // pred_region
      %1002 = dma.done [#allocation3], 128
    $region29: #{tpu_custom_call.1} parent=1 // pred_fallthru
      _
    %1003 = vsyncpa [#allocation3], 1

</llo_original>
